<compile_context>
chip_gen: v7x
topology: tpu7x:2x2x1
jax: 0.10.0
libtpu: 0.0.40
codegen_flags: <defaults>
</compile_context>

<pallas_src>
import functools

import jax
import jax.numpy as jnp
from jax import lax
from jax.experimental import pallas as pl
from jax.experimental.pallas import tpu as pltpu


# Explicit scoped-VMEM budget: safe on v5e/v6e (128 MiB) and v7x (64 MiB).
_VMEM_LIMIT_BYTES = 32 * 1024 * 1024


def _pick_tile(dim, preferred, granule):
    """Largest tile <= `preferred` that divides `dim` and is a multiple of
    `granule`; falls back to the full extent (always legal for BlockSpec)."""
    if dim <= preferred:
        return dim
    t = (preferred // granule) * granule
    while t >= granule:
        if dim % t == 0:
            return t
        t -= granule
    return dim


def _reconstruct_tile(w_ref, u_ref, v_ref, a_ref, b_ref, r_ref, c_ref,
                      weight_beta, mask_alpha1, mask_alpha2):
    """Effective weight + mask scores for one (TO, TI) tile, all in f32.

    Identical op sequence in both kernels, and the rank dimension is always
    contracted in full, so per-element results are bit-identical regardless
    of tiling -- the threshold comparison in kernel 2 is consistent with the
    scores produced by kernel 1.
    """
    w = (w_ref[...].astype(jnp.float32)
         + weight_beta * jnp.dot(u_ref[...], v_ref[...],
                                 preferred_element_type=jnp.float32))
    scores = (jnp.abs(w)
              + mask_alpha1 * jnp.dot(a_ref[...], b_ref[...],
                                      preferred_element_type=jnp.float32)
              + mask_alpha2 * (r_ref[...].astype(jnp.float32)
                               + c_ref[...].astype(jnp.float32)))
    return w, scores


# ----------------------------------------------------------------------------
# Kernel 1: mask scores only (weight is NOT materialized), tiled over (O, I)
# ----------------------------------------------------------------------------
def _scores_kernel(w_ref, u_ref, v_ref, a_ref, b_ref, r_ref, c_ref,
                   scores_out_ref,
                   *, weight_beta, mask_alpha1, mask_alpha2):
    _, scores = _reconstruct_tile(w_ref, u_ref, v_ref, a_ref, b_ref,
                                  r_ref, c_ref,
                                  weight_beta, mask_alpha1, mask_alpha2)
    scores_out_ref[...] = scores


def compute_mask_scores(W, U, V, A, Bm, R, C,
                        weight_beta, mask_alpha1, mask_alpha2,
                        *, to_pref=256, ti_pref=512):
    O, I = W.shape
    Rw = U.shape[1]
    Rm = A.shape[1]
    TO = _pick_tile(O, to_pref, 8)      # sublane tile
    TI = _pick_tile(I, ti_pref, 128)    # lane tile
    grid = (O // TO, I // TI)           # I-tiles innermost: U/A blocks reused

    kernel = functools.partial(_scores_kernel,
                               weight_beta=weight_beta,
                               mask_alpha1=mask_alpha1,
                               mask_alpha2=mask_alpha2)
    return pl.pallas_call(
        kernel,
        out_shape=jax.ShapeDtypeStruct((O, I), jnp.float32),
        grid=grid,
        in_specs=[
            pl.BlockSpec((TO, TI), lambda i, j: (i, j)),   # W
            pl.BlockSpec((TO, Rw), lambda i, j: (i, 0)),   # U  (reused over j)
            pl.BlockSpec((Rw, TI), lambda i, j: (0, j)),   # V
            pl.BlockSpec((TO, Rm), lambda i, j: (i, 0)),   # A  (reused over j)
            pl.BlockSpec((Rm, TI), lambda i, j: (0, j)),   # B
            pl.BlockSpec((TO, 1), lambda i, j: (i, 0)),    # R as (O, 1)
            pl.BlockSpec((1, TI), lambda i, j: (0, j)),    # C as (1, I)
        ],
        out_specs=pl.BlockSpec((TO, TI), lambda i, j: (i, j)),
        compiler_params=pltpu.CompilerParams(
            dimension_semantics=("parallel", "parallel"),
            vmem_limit_bytes=_VMEM_LIMIT_BYTES),
    )(W, U, V, A, Bm, R.reshape(O, 1), C.reshape(1, I))


# ----------------------------------------------------------------------------
# Glue: scalar pruning threshold (k-th smallest score).
# TODO(synk): the global sort/top-k of SparseBinarizer has no clean
# single-kernel Pallas equivalent; it is done in plain JAX.  Tie-breaking at
# exactly the threshold value may differ from torch.argsort's ordering.
# ----------------------------------------------------------------------------
def prune_threshold(mask_scores, num_prune):
    flat = mask_scores.reshape(-1).astype(jnp.float32)
    kth_smallest = jnp.sort(flat)[num_prune - 1]
    return kth_smallest.reshape(1)


_NO_PRUNE_THRESH = -jnp.finfo(jnp.float32).max   # every finite score survives


# ----------------------------------------------------------------------------
# Kernel 2: masked linear
#   y = x @ where(scores > thresh, weight, 0).T + bias
# The effective weight AND scores are re-derived per tile from W and the
# rank-8 factors (never read back from HBM).
# ----------------------------------------------------------------------------
def _masked_linear_kernel(thresh_ref, x_ref, w_ref, u_ref, v_ref, a_ref,
                          b_ref, r_ref, c_ref, bias_ref,
                          y_ref, acc_ref,
                          *, weight_beta, mask_alpha1, mask_alpha2):
    k = pl.program_id(1)

    @pl.when(k == 0)
    def _():
        acc_ref[...] = jnp.zeros_like(acc_ref)

    w, scores = _reconstruct_tile(w_ref, u_ref, v_ref, a_ref, b_ref,
                                  r_ref, c_ref,
                                  weight_beta, mask_alpha1, mask_alpha2)
    thresh = thresh_ref[0]
    masked_w = jnp.where(scores > thresh, w, jnp.zeros_like(w)).astype(x_ref.dtype)
    # x (B, TK) contracted with masked_w (TO, TK) along dim 1: the MXU consumes
    # the (O, I) tile as a transposed RHS -- no materialized transpose, and the
    # output O-dim stays lane-dense.
    acc_ref[...] += lax.dot_general(
        x_ref[...], masked_w,
        dimension_numbers=(((1,), (1,)), ((), ())),
        preferred_element_type=jnp.float32)

    @pl.when(k == pl.num_programs(1) - 1)
    def _():
        y_ref[...] = (acc_ref[...]
                      + bias_ref[...].astype(jnp.float32)).astype(y_ref.dtype)


def masked_linear(x, W, U, V, A, Bm, R, C, bias, thresh,
                  weight_beta, mask_alpha1, mask_alpha2,
                  *, to_pref=256, ti_pref=512):
    Bsz, I = x.shape
    O = W.shape[0]
    Rw = U.shape[1]
    Rm = A.shape[1]
    # Pad the (small) batch to a sublane multiple so stores stay unmasked.
    Bp = ((Bsz + 7) // 8) * 8
    if Bp != Bsz:
        x = jnp.pad(x, ((0, Bp - Bsz), (0, 0)))
    TO = _pick_tile(O, to_pref, 128)    # output lane dim: 128-multiple
    TK = _pick_tile(I, ti_pref, 128)    # reduction tile
    grid = (O // TO, I // TK)

    kernel = functools.partial(_masked_linear_kernel,
                               weight_beta=weight_beta,
                               mask_alpha1=mask_alpha1,
                               mask_alpha2=mask_alpha2)
    y = pl.pallas_call(
        kernel,
        out_shape=jax.ShapeDtypeStruct((Bp, O), x.dtype),
        grid=grid,
        in_specs=[
            pl.BlockSpec(memory_space=pltpu.MemorySpace.SMEM),   # thresh (1,)
            pl.BlockSpec((Bp, TK), lambda o, k: (0, k)),         # x
            pl.BlockSpec((TO, TK), lambda o, k: (o, k)),         # W
            pl.BlockSpec((TO, Rw), lambda o, k: (o, 0)),         # U (reused over k)
            pl.BlockSpec((Rw, TK), lambda o, k: (0, k)),         # V
            pl.BlockSpec((TO, Rm), lambda o, k: (o, 0)),         # A (reused over k)
            pl.BlockSpec((Rm, TK), lambda o, k: (0, k)),         # B
            pl.BlockSpec((TO, 1), lambda o, k: (o, 0)),          # R as (O, 1)
            pl.BlockSpec((1, TK), lambda o, k: (0, k)),          # C as (1, I)
            pl.BlockSpec((1, TO), lambda o, k: (0, o)),          # bias (1, O)
        ],
        out_specs=pl.BlockSpec((Bp, TO), lambda o, k: (0, o)),
        scratch_shapes=[pltpu.VMEM((Bp, TO), jnp.float32)],
        compiler_params=pltpu.CompilerParams(
            dimension_semantics=("parallel", "arbitrary"),
            vmem_limit_bytes=_VMEM_LIMIT_BYTES),
    )(thresh, x, W, U, V, A, Bm, R.reshape(O, 1), C.reshape(1, I),
      bias.reshape(1, O))
    return y[:Bsz]


# ----------------------------------------------------------------------------
# Full SparseLinear forward
# ----------------------------------------------------------------------------
def sparse_linear_forward(x, params, *, weight_beta=1.0, mask_alpha1=1.0,
                          mask_alpha2=1.0, cur_sparsity=0.0):
    O, I = params["W"].shape
    num_prune = int(O * I * cur_sparsity)   # static Python int
    if num_prune > 0:
        scores = compute_mask_scores(
            params["W"], params["U"], params["V"], params["A"], params["B"],
            params["R"], params["C"], weight_beta, mask_alpha1, mask_alpha2)
        thresh = prune_threshold(scores, num_prune)
    else:
        # Static fast path: no pruning -> no dense scores, no global sort.
        thresh = jnp.full((1,), _NO_PRUNE_THRESH, dtype=jnp.float32)
    return masked_linear(
        x, params["W"], params["U"], params["V"], params["A"], params["B"],
        params["R"], params["C"], params["bias"], thresh,
        weight_beta, mask_alpha1, mask_alpha2)


# ----------------------------------------------------------------------------
# Pure-JAX references
# ----------------------------------------------------------------------------
def weight_scores_reference(params, weight_beta, mask_alpha1, mask_alpha2):
    weight = params["W"] + weight_beta * (params["U"] @ params["V"])
    scores = (jnp.abs(weight) + mask_alpha1 * (params["A"] @ params["B"])
              + mask_alpha2 * (params["R"][:, None] + params["C"][None, :]))
    return weight, scores


def sparse_linear_reference(x, params, *, weight_beta=1.0, mask_alpha1=1.0,
                            mask_alpha2=1.0, cur_sparsity=0.0):
    # Faithful to the PyTorch module: argsort-based SparseBinarizer.
    weight, scores = weight_scores_reference(
        params, weight_beta, mask_alpha1, mask_alpha2)
    num_prune = int(scores.size * cur_sparsity)
    flat = scores.reshape(-1)
    mask_flat = jnp.ones_like(flat)
    if num_prune > 0:
        prune_idx = jnp.argsort(flat)[:num_prune]
        mask_flat = mask_flat.at[prune_idx].set(0.0)
    mask = mask_flat.reshape(scores.shape)
    return x @ (mask * weight).T + params["bias"][None, :]


if __name__ == "__main__":
    # A small Linear(in=1024, out=512), rank-8 PST factors, batch of 8 tokens.
    # Large enough that both kernels get a 2x2 grid with the default tiles.
    batch, in_features, out_features = 8, 1024, 512
    weight_rank, mask_rank = 8, 8
    dtype = jnp.float32

    key = jax.random.PRNGKey(0)
    ks = jax.random.split(key, 9)

    W = jax.random.normal(ks[0], (out_features, in_features), dtype) * 0.1
    bias = jax.random.normal(ks[1], (out_features,), dtype) * 0.1
    U = jax.random.normal(ks[2], (out_features, weight_rank), dtype)
    A = jax.random.normal(ks[3], (out_features, mask_rank), dtype)
    x = jax.random.normal(ks[4], (batch, in_features), dtype)

    # Nonzero low-rank / bias factors: exercises the reconstruction path.
    params_lr = {
        "W": W, "bias": bias, "U": U,
        "V": jax.random.normal(ks[5], (weight_rank, in_features), dtype) * 0.02,
        "A": A,
        "B": jax.random.normal(ks[6], (mask_rank, in_features), dtype) * 0.02,
        "R": jax.random.normal(ks[7], (out_features,), dtype) * 0.01,
        "C": jax.random.normal(ks[8], (in_features,), dtype) * 0.01,
    }

    # --- Check 1: kernel 1 (mask scores) against the reference -------------
    s_k = compute_mask_scores(
        params_lr["W"], params_lr["U"], params_lr["V"], params_lr["A"],
        params_lr["B"], params_lr["R"], params_lr["C"], 1.0, 1.0, 1.0)
    s_k = jax.block_until_ready(s_k)
    _, s_ref = weight_scores_reference(params_lr, 1.0, 1.0, 1.0)
    assert jnp.allclose(s_k, s_ref, atol=2e-3, rtol=2e-3)

    # --- Check 2: full forward, nonzero factors, 25% sparsity ---------------
    cur_sparsity = 0.25
    y = sparse_linear_forward(x, params_lr, cur_sparsity=cur_sparsity)
    y = jax.block_until_ready(y)
    y_ref = sparse_linear_reference(x, params_lr, cur_sparsity=cur_sparsity)
    assert y.shape == (batch, out_features)
    # Relative-to-max criterion: tolerates MXU-vs-XLA matmul precision
    # differences and (vanishingly rare) tie-breaking at the exact threshold
    # value, while still catching real bugs (mask polarity, bias, indexing).
    max_err = float(jnp.max(jnp.abs(y - y_ref)))
    scale = float(jnp.max(jnp.abs(y_ref)))
    assert max_err <= 2e-2 * scale + 1e-3, (max_err, scale)

    # --- Check 3: module's actual init (V/B/R/C zeros), sparsity 0 ----------
    params_init = {
        "W": W, "bias": bias, "U": U, "A": A,
        "V": jnp.zeros((weight_rank, in_features), dtype),
        "B": jnp.zeros((mask_rank, in_features), dtype),
        "R": jnp.zeros((out_features,), dtype),
        "C": jnp.zeros((in_features,), dtype),
    }
    y0 = sparse_linear_forward(x, params_init, cur_sparsity=0.0)
    y0 = jax.block_until_ready(y0)
    y0_ref = sparse_linear_reference(x, params_init, cur_sparsity=0.0)
    max_err0 = float(jnp.max(jnp.abs(y0 - y0_ref)))
    scale0 = float(jnp.max(jnp.abs(y0_ref)))
    assert max_err0 <= 2e-2 * scale0 + 1e-3, (max_err0, scale0)

    print("KERNEL_OK")
</pallas_src>

<mosaic_0001>
module attributes {stable_mosaic.version = 11 : i64} {
  func.func @_scores_kernel(%arg0: i32, %arg1: i32, %arg2: memref<256x512xf32, #tpu.memory_space<vmem>>, %arg3: memref<256x8xf32, #tpu.memory_space<vmem>>, %arg4: memref<8x512xf32, #tpu.memory_space<vmem>>, %arg5: memref<256x8xf32, #tpu.memory_space<vmem>>, %arg6: memref<8x512xf32, #tpu.memory_space<vmem>>, %arg7: memref<256x1xf32, #tpu.memory_space<vmem>>, %arg8: memref<1x512xf32, #tpu.memory_space<vmem>>, %arg9: memref<256x512xf32, #tpu.memory_space<vmem>>) attributes {dimension_semantics = [#tpu.dimension_semantics<parallel>, #tpu.dimension_semantics<parallel>], iteration_bounds = array<i64: 2, 2>, scalar_prefetch = 0 : i64, scratch_operands = 0 : i64, tpu.core_type = #tpu.core_type<tc>, window_params = [{transform_indices = @transform_0, window_bounds = array<i64: 256, 512>}, {transform_indices = @transform_1, window_bounds = array<i64: 256, 8>}, {transform_indices = @transform_2, window_bounds = array<i64: 8, 512>}, {transform_indices = @transform_3, window_bounds = array<i64: 256, 8>}, {transform_indices = @transform_4, window_bounds = array<i64: 8, 512>}, {transform_indices = @transform_5, window_bounds = array<i64: 256, 1>}, {transform_indices = @transform_6, window_bounds = array<i64: 1, 512>}, {transform_indices = @transform_7, window_bounds = array<i64: 256, 512>}]} {
    %c0 = arith.constant 0 : index
    %c0_0 = arith.constant 0 : index
    %0 = vector.load %arg2[%c0, %c0_0] : memref<256x512xf32, #tpu.memory_space<vmem>>, vector<256x512xf32>
    %c0_1 = arith.constant 0 : index
    %c0_2 = arith.constant 0 : index
    %1 = vector.load %arg3[%c0_1, %c0_2] : memref<256x8xf32, #tpu.memory_space<vmem>>, vector<256x8xf32>
    %c0_3 = arith.constant 0 : index
    %c0_4 = arith.constant 0 : index
    %2 = vector.load %arg4[%c0_3, %c0_4] : memref<8x512xf32, #tpu.memory_space<vmem>>, vector<8x512xf32>
    %cst = arith.constant dense<0.000000e+00> : vector<256x512xf32>
    %3 = tpu.matmul %1, %2, %cst {dimension_numbers = #tpu.dot_dimension_numbers<[1], [0], [0], [1], [0, 0, 1, 1], [], []>} : vector<256x8xf32>, vector<8x512xf32>, vector<256x512xf32> -> vector<256x512xf32>
    %cst_5 = arith.constant 1.000000e+00 : f32
    %4 = vector.broadcast %cst_5 : f32 to vector<256x512xf32>
    %5 = arith.mulf %4, %3 : vector<256x512xf32>
    %6 = arith.addf %0, %5 : vector<256x512xf32>
    %7 = math.absf %6 : vector<256x512xf32>
    %c0_6 = arith.constant 0 : index
    %c0_7 = arith.constant 0 : index
    %8 = vector.load %arg5[%c0_6, %c0_7] : memref<256x8xf32, #tpu.memory_space<vmem>>, vector<256x8xf32>
    %c0_8 = arith.constant 0 : index
    %c0_9 = arith.constant 0 : index
    %9 = vector.load %arg6[%c0_8, %c0_9] : memref<8x512xf32, #tpu.memory_space<vmem>>, vector<8x512xf32>
    %cst_10 = arith.constant dense<0.000000e+00> : vector<256x512xf32>
    %10 = tpu.matmul %8, %9, %cst_10 {dimension_numbers = #tpu.dot_dimension_numbers<[1], [0], [0], [1], [0, 0, 1, 1], [], []>} : vector<256x8xf32>, vector<8x512xf32>, vector<256x512xf32> -> vector<256x512xf32>
    %cst_11 = arith.constant 1.000000e+00 : f32
    %11 = vector.broadcast %cst_11 : f32 to vector<256x512xf32>
    %12 = arith.mulf %11, %10 : vector<256x512xf32>
    %13 = arith.addf %7, %12 : vector<256x512xf32>
    %c0_12 = arith.constant 0 : index
    %c0_13 = arith.constant 0 : index
    %14 = vector.load %arg7[%c0_12, %c0_13] : memref<256x1xf32, #tpu.memory_space<vmem>>, vector<256x1xf32>
    %c0_14 = arith.constant 0 : index
    %c0_15 = arith.constant 0 : index
    %15 = vector.load %arg8[%c0_14, %c0_15] : memref<1x512xf32, #tpu.memory_space<vmem>>, vector<1x512xf32>
    %16 = vector.broadcast %14 : vector<256x1xf32> to vector<256x512xf32>
    %17 = vector.broadcast %15 : vector<1x512xf32> to vector<256x512xf32>
    %18 = arith.addf %16, %17 : vector<256x512xf32>
    %cst_16 = arith.constant 1.000000e+00 : f32
    %19 = vector.broadcast %cst_16 : f32 to vector<256x512xf32>
    %20 = arith.mulf %19, %18 : vector<256x512xf32>
    %21 = arith.addf %13, %20 : vector<256x512xf32>
    %c0_17 = arith.constant 0 : index
    %c0_18 = arith.constant 0 : index
    %22 = vector.load %arg9[%c0_17, %c0_18] : memref<256x512xf32, #tpu.memory_space<vmem>>, vector<256x512xf32>
    tpu.vector_store %arg9[%c0_17, %c0_18], %21 {strides = array<i32>} : memref<256x512xf32, #tpu.memory_space<vmem>>, vector<256x512xf32>,
    return
  }
  func.func @transform_0(%arg0: i32, %arg1: i32) -> (i32, i32) {
    %c0_i32 = arith.constant 0 : i32
    return %arg0, %arg1 : i32, i32
  }
  func.func @transform_1(%arg0: i32, %arg1: i32) -> (i32, i32) {
    %c0_i32 = arith.constant 0 : i32
    %c0_i32_0 = arith.constant 0 : i32
    return %arg0, %c0_i32 : i32, i32
  }
  func.func @transform_2(%arg0: i32, %arg1: i32) -> (i32, i32) {
    %c0_i32 = arith.constant 0 : i32
    %c0_i32_0 = arith.constant 0 : i32
    return %c0_i32, %arg1 : i32, i32
  }
  func.func @transform_3(%arg0: i32, %arg1: i32) -> (i32, i32) {
    %c0_i32 = arith.constant 0 : i32
    %c0_i32_0 = arith.constant 0 : i32
    return %arg0, %c0_i32 : i32, i32
  }
  func.func @transform_4(%arg0: i32, %arg1: i32) -> (i32, i32) {
    %c0_i32 = arith.constant 0 : i32
    %c0_i32_0 = arith.constant 0 : i32
    return %c0_i32, %arg1 : i32, i32
  }
  func.func @transform_5(%arg0: i32, %arg1: i32) -> (i32, i32) {
    %c0_i32 = arith.constant 0 : i32
    %c0_i32_0 = arith.constant 0 : i32
    return %arg0, %c0_i32 : i32, i32
  }
  func.func @transform_6(%arg0: i32, %arg1: i32) -> (i32, i32) {
    %c0_i32 = arith.constant 0 : i32
    %c0_i32_0 = arith.constant 0 : i32
    return %c0_i32, %arg1 : i32, i32
  }
  func.func @transform_7(%arg0: i32, %arg1: i32) -> (i32, i32) {
    %c0_i32 = arith.constant 0 : i32
    return %arg0, %arg1 : i32, i32
  }
}

</mosaic_0001>

<llo_original>
// kernel: tpu_custom_call.1
$region0: #{tpu_custom_call.1}
  #allocation0 [shape = 'u32[]', space=smem, size = 0x4, offset = 0x4, fixed_abs, tag = 'smem constant byte address 0x4 - core index']
  #allocation1 [shape = 'u32[144,128]{1,0:T(1,128)}', space=vmem, size = 0x12000, scoped, tag = 'internal scratch']
  %s0 = inlined_call_operand.hbm [shape: f32[512,1024], index: 0, kind: input, shape index: {}]
  %s1 = inlined_call_operand.vmem [shape: f32[512,8], index: 1, kind: input, shape index: {}]
  %s2 = inlined_call_operand.hbm [shape: f32[8,1024], index: 2, kind: input, shape index: {}]
  %s3 = inlined_call_operand.vmem [shape: f32[512,8], index: 3, kind: input, shape index: {}]
  %s4 = inlined_call_operand.hbm [shape: f32[8,1024], index: 4, kind: input, shape index: {}]
  %s5 = inlined_call_operand.vmem [shape: f32[512,1], index: 5, kind: input, shape index: {}]
  %s6 = inlined_call_operand.hbm [shape: f32[1,1024], index: 6, kind: input, shape index: {}]
  %s7 = inlined_call_operand.hbm [shape: f32[512,1024], index: 7, kind: output, shape index: {}]
  %s8 = sld [smem:[#allocation0]]
  $region77: #{tpu_custom_call.1} parent=0
    _
  %s10 = ssub.s32 1, %s8
  %s11 = scalar_select 0, %s10, %s8
  $region1: #{tpu_custom_call.1} parent=0
    #allocation2 [shape = 'u8[1048576]{0}', space=vmem, size = 0x100000, scoped, tag = 'input window, operand 0']
    #allocation3 [shape = 's32[2]{0}', space=sflag, size = 0x8, scoped, tag = 'scoped memory for tpu_custom_call.1']
    #allocation4 [shape = 's32[2]{0}', space=sflag, size = 0x8, scoped, tag = 'scoped memory for tpu_custom_call.1']
    #allocation5 [shape = 'u8[32768]{0}', space=vmem, size = 0x8000, scoped, tag = 'input window, operand 2']
    #allocation6 [shape = 's32[2]{0}', space=sflag, size = 0x8, scoped, tag = 'scoped memory for tpu_custom_call.1']
    #allocation7 [shape = 'u8[32768]{0}', space=vmem, size = 0x8000, scoped, tag = 'input window, operand 4']
    #allocation8 [shape = 'u8[4096]{0}', space=vmem, size = 0x1000, scoped, tag = 'input window, operand 6']
    #allocation9 [shape = 's32[2]{0}', space=sflag, size = 0x8, scoped, tag = 'scoped memory for tpu_custom_call.1']
    #allocation10 [shape = 'u8[1048576]{0}', space=vmem, size = 0x100000, scoped, tag = 'output window, operand 0']
    %12 = vsyncpa [#allocation3], 0
    %s13 = scalar_lea.sflag [#allocation3], 1
    %14 = vsyncpa %s13, 0
    %15 = vsyncpa [#allocation6], 0
    %s16 = scalar_lea.sflag [#allocation6], 1
    %17 = vsyncpa %s16, 0
    %18 = vsyncpa [#allocation9], 0
    %s19 = scalar_lea.sflag [#allocation9], 1
    %20 = vsyncpa %s19, 0
    %21 = vsyncpa [#allocation4], 0
    %s22 = scalar_lea.sflag [#allocation4], 1
    %23 = vsyncpa %s22, 0
    loop: start=0, step=1, limit=6
    $region2: #{tpu_custom_call.1} parent=1 // loop_pre_header
      _
    $region3: #{tpu_custom_call.1} parent=1 // loop_header
      %s25 = sphi 0, %s29
      %p26 = scmp.ge.s32.totalorder %s25, 6
      %s32 = sphi 0, %s44
      %s33 = sphi 0, %s40
      %s34 = sphi 0, %s32
      %s35 = sphi 0, %s33
      %s36 = sphi 0, %s34
      %s37 = sphi 0, %s35
      %s49 = sphi 0, %s51
      %s52 = sphi 0, %s49
      %s53 = sphi 0, %s52
      %s69 = sphi 0, %s53
      %s75 = sphi 0, %s77
      %s78 = sphi 0, %s75
      %s79 = sphi 0, %s78
      %s95 = sphi 0, %s79
      %s101 = sphi 0, %s103
      %s104 = sphi 0, %s101
      %s105 = sphi 0, %s104
      %s121 = sphi 0, %s105
      %s127 = sphi 0, %s129
      %s130 = sphi 0, %s127
      %s131 = sphi 0, %s130
      %s147 = sphi 0, %s131
      %s153 = sphi 0, %s155
      %s156 = sphi 0, %s153
      %s157 = sphi 0, %s156
      %s173 = sphi 0, %s157
      %s179 = sphi 0, %s181
      %s182 = sphi 0, %s179
      %s183 = sphi 0, %s182
      %s199 = sphi 0, %s183
      %s205 = sphi 0, %s207
      %s208 = sphi 0, %s205
      %s209 = sphi 0, %s208
      %s225 = sphi 0, %s209
      %s233 = sphi 0, %s235
      %s236 = sphi 0, %s233
      %s237 = sphi 0, %s236
      %s253 = sphi 0, %s237
    $region4: #{tpu_custom_call.1} parent=1 // loop_header_branch
      %28 = sbr.rel (%p26) target = $region8
    $region5: #{tpu_custom_call.1} parent=1 // loop_body
      %s30 = ssub.s32 %s25, 1
      %s31 = ssub.s32 %s25, 2
      %s38 = sadd.s32 1, %s33
      %p39 = scmp.ge.s32.totalorder %s38, 2
      %s40 = scalar_select %p39, 0, %s38
      %s41 = sadd.s32 1, %s32
      %s42 = scalar_select %p39, %s41, %s32
      %p43 = scmp.ge.s32.totalorder %s42, 2
      %s44 = scalar_select %p43, 0, %s42
      %s45 = ssub.s32 %s32, %s44
      %s46 = ssub.s32 %s33, %s40
      %s47 = sor.u32 %s45, %s46
      %p48 = scmp.eq.s32.totalorder %s47, 0
      %s50 = sadd.s32 %s49, 1
      %s51 = scalar_select %p48, %s49, %s50
      %p54 = pneg %p48
      %p55 = scmp.eq.s32.totalorder %s25, 3
      %p56 = por %p54, %p55
      %p57 = scmp.ne.s32.totalorder %s49, %s52
      %p58 = scmp.eq.s32.totalorder %s25, 0
      %p59 = por %p57, %p58
      %p60 = scmp.ne.s32.totalorder %s49, %s52
      %p61 = scmp.eq.s32.totalorder %s30, 3
      %p62 = por %p60, %p61
      %p63 = scmp.ne.s32.totalorder %s52, %s53
      %p64 = scmp.eq.s32.totalorder %s30, 0
      %p65 = por %p63, %p64
      %p66 = scmp.ne.s32.totalorder %s52, %s53
      %p67 = scmp.eq.s32.totalorder %s31, 3
      %p68 = por %p66, %p67
      %p70 = scmp.ne.s32.totalorder %s53, %s69
      %p71 = scmp.eq.s32.totalorder %s31, 0
      %p72 = por %p70, %p71
      %s73 = ssub.s32 %s32, %s44
      %p74 = scmp.eq.s32.totalorder %s73, 0
      %s76 = sadd.s32 %s75, 1
      %s77 = scalar_select %p74, %s75, %s76
      %p80 = pneg %p74
      %p81 = scmp.eq.s32.totalorder %s25, 3
      %p82 = por %p80, %p81
      %p83 = scmp.ne.s32.totalorder %s75, %s78
      %p84 = scmp.eq.s32.totalorder %s25, 0
      %p85 = por %p83, %p84
      %p86 = scmp.ne.s32.totalorder %s75, %s78
      %p87 = scmp.eq.s32.totalorder %s30, 3
      %p88 = por %p86, %p87
      %p89 = scmp.ne.s32.totalorder %s78, %s79
      %p90 = scmp.eq.s32.totalorder %s30, 0
      %p91 = por %p89, %p90
      %p92 = scmp.ne.s32.totalorder %s78, %s79
      %p93 = scmp.eq.s32.totalorder %s31, 3
      %p94 = por %p92, %p93
      %p96 = scmp.ne.s32.totalorder %s79, %s95
      %p97 = scmp.eq.s32.totalorder %s31, 0
      %p98 = por %p96, %p97
      %s99 = ssub.s32 %s33, %s40
      %p100 = scmp.eq.s32.totalorder %s99, 0
      %s102 = sadd.s32 %s101, 1
      %s103 = scalar_select %p100, %s101, %s102
      %p106 = pneg %p100
      %p107 = scmp.eq.s32.totalorder %s25, 3
      %p108 = por %p106, %p107
      %p109 = scmp.ne.s32.totalorder %s101, %s104
      %p110 = scmp.eq.s32.totalorder %s25, 0
      %p111 = por %p109, %p110
      %p112 = scmp.ne.s32.totalorder %s101, %s104
      %p113 = scmp.eq.s32.totalorder %s30, 3
      %p114 = por %p112, %p113
      %p115 = scmp.ne.s32.totalorder %s104, %s105
      %p116 = scmp.eq.s32.totalorder %s30, 0
      %p117 = por %p115, %p116
      %p118 = scmp.ne.s32.totalorder %s104, %s105
      %p119 = scmp.eq.s32.totalorder %s31, 3
      %p120 = por %p118, %p119
      %p122 = scmp.ne.s32.totalorder %s105, %s121
      %p123 = scmp.eq.s32.totalorder %s31, 0
      %p124 = por %p122, %p123
      %s125 = ssub.s32 %s32, %s44
      %p126 = scmp.eq.s32.totalorder %s125, 0
      %s128 = sadd.s32 %s127, 1
      %s129 = scalar_select %p126, %s127, %s128
      %p132 = pneg %p126
      %p133 = scmp.eq.s32.totalorder %s25, 3
      %p134 = por %p132, %p133
      %p135 = scmp.ne.s32.totalorder %s127, %s130
      %p136 = scmp.eq.s32.totalorder %s25, 0
      %p137 = por %p135, %p136
      %p138 = scmp.ne.s32.totalorder %s127, %s130
      %p139 = scmp.eq.s32.totalorder %s30, 3
      %p140 = por %p138, %p139
      %p141 = scmp.ne.s32.totalorder %s130, %s131
      %p142 = scmp.eq.s32.totalorder %s30, 0
      %p143 = por %p141, %p142
      %p144 = scmp.ne.s32.totalorder %s130, %s131
      %p145 = scmp.eq.s32.totalorder %s31, 3
      %p146 = por %p144, %p145
      %p148 = scmp.ne.s32.totalorder %s131, %s147
      %p149 = scmp.eq.s32.totalorder %s31, 0
      %p150 = por %p148, %p149
      %s151 = ssub.s32 %s33, %s40
      %p152 = scmp.eq.s32.totalorder %s151, 0
      %s154 = sadd.s32 %s153, 1
      %s155 = scalar_select %p152, %s153, %s154
      %p158 = pneg %p152
      %p159 = scmp.eq.s32.totalorder %s25, 3
      %p160 = por %p158, %p159
      %p161 = scmp.ne.s32.totalorder %s153, %s156
      %p162 = scmp.eq.s32.totalorder %s25, 0
      %p163 = por %p161, %p162
      %p164 = scmp.ne.s32.totalorder %s153, %s156
      %p165 = scmp.eq.s32.totalorder %s30, 3
      %p166 = por %p164, %p165
      %p167 = scmp.ne.s32.totalorder %s156, %s157
      %p168 = scmp.eq.s32.totalorder %s30, 0
      %p169 = por %p167, %p168
      %p170 = scmp.ne.s32.totalorder %s156, %s157
      %p171 = scmp.eq.s32.totalorder %s31, 3
      %p172 = por %p170, %p171
      %p174 = scmp.ne.s32.totalorder %s157, %s173
      %p175 = scmp.eq.s32.totalorder %s31, 0
      %p176 = por %p174, %p175
      %s177 = ssub.s32 %s32, %s44
      %p178 = scmp.eq.s32.totalorder %s177, 0
      %s180 = sadd.s32 %s179, 1
      %s181 = scalar_select %p178, %s179, %s180
      %p184 = pneg %p178
      %p185 = scmp.eq.s32.totalorder %s25, 3
      %p186 = por %p184, %p185
      %p187 = scmp.ne.s32.totalorder %s179, %s182
      %p188 = scmp.eq.s32.totalorder %s25, 0
      %p189 = por %p187, %p188
      %p190 = scmp.ne.s32.totalorder %s179, %s182
      %p191 = scmp.eq.s32.totalorder %s30, 3
      %p192 = por %p190, %p191
      %p193 = scmp.ne.s32.totalorder %s182, %s183
      %p194 = scmp.eq.s32.totalorder %s30, 0
      %p195 = por %p193, %p194
      %p196 = scmp.ne.s32.totalorder %s182, %s183
      %p197 = scmp.eq.s32.totalorder %s31, 3
      %p198 = por %p196, %p197
      %p200 = scmp.ne.s32.totalorder %s183, %s199
      %p201 = scmp.eq.s32.totalorder %s31, 0
      %p202 = por %p200, %p201
      %s203 = ssub.s32 %s33, %s40
      %p204 = scmp.eq.s32.totalorder %s203, 0
      %s206 = sadd.s32 %s205, 1
      %s207 = scalar_select %p204, %s205, %s206
      %p210 = pneg %p204
      %p211 = scmp.eq.s32.totalorder %s25, 3
      %p212 = por %p210, %p211
      %p213 = scmp.ne.s32.totalorder %s205, %s208
      %p214 = scmp.eq.s32.totalorder %s25, 0
      %p215 = por %p213, %p214
      %p216 = scmp.ne.s32.totalorder %s205, %s208
      %p217 = scmp.eq.s32.totalorder %s30, 3
      %p218 = por %p216, %p217
      %p219 = scmp.ne.s32.totalorder %s208, %s209
      %p220 = scmp.eq.s32.totalorder %s30, 0
      %p221 = por %p219, %p220
      %p222 = scmp.ne.s32.totalorder %s208, %s209
      %p223 = scmp.eq.s32.totalorder %s31, 3
      %p224 = por %p222, %p223
      %p226 = scmp.ne.s32.totalorder %s209, %s225
      %p227 = scmp.eq.s32.totalorder %s31, 0
      %p228 = por %p226, %p227
      %s229 = ssub.s32 %s32, %s44
      %s230 = ssub.s32 %s33, %s40
      %s231 = sor.u32 %s229, %s230
      %p232 = scmp.eq.s32.totalorder %s231, 0
      %s234 = sadd.s32 %s233, 1
      %s235 = scalar_select %p232, %s233, %s234
      %p238 = pneg %p232
      %p239 = scmp.eq.s32.totalorder %s25, 3
      %p240 = por %p238, %p239
      %p241 = scmp.ne.s32.totalorder %s233, %s236
      %p242 = scmp.eq.s32.totalorder %s25, 0
      %p243 = por %p241, %p242
      %p244 = scmp.ne.s32.totalorder %s233, %s236
      %p245 = scmp.eq.s32.totalorder %s30, 3
      %p246 = por %p244, %p245
      %p247 = scmp.ne.s32.totalorder %s236, %s237
      %p248 = scmp.eq.s32.totalorder %s30, 0
      %p249 = por %p247, %p248
      %p250 = scmp.ne.s32.totalorder %s236, %s237
      %p251 = scmp.eq.s32.totalorder %s31, 3
      %p252 = por %p250, %p251
      %p254 = scmp.ne.s32.totalorder %s237, %s253
      %p255 = scmp.eq.s32.totalorder %s31, 0
      %p256 = por %p254, %p255
      %p257 = scmp.le.s32.totalorder 1, %s25
      %p258 = scmp.lt.s32.totalorder %s25, 5
      %p259 = pnand %p257, %p258
      %p260 = pneg %p259
      // Predicated region
      $region9: #{tpu_custom_call.1} parent=5 // pred_check
        _
      $region10: #{tpu_custom_call.1} parent=5 // pred_check_branch
        %262 = sbr.rel (%p259) target = $region12
      $region11: #{tpu_custom_call.1} parent=5 // pred_region
        %s263 = ssub.s32 %s25, 1
      $region12: #{tpu_custom_call.1} parent=5 // pred_fallthru
        _
      %p264 = scmp.lt.s32.totalorder %s25, 4
      // Predicated region
      $region13: #{tpu_custom_call.1} parent=5 // pred_check
        %p265 = pneg %p264
      $region14: #{tpu_custom_call.1} parent=5 // pred_check_branch
        %267 = sbr.rel (%p265) target = $region16
      $region15: #{tpu_custom_call.1} parent=5 // pred_region
        // Predicated region
        $region17: #{tpu_custom_call.1} parent=15 // pred_check
          %p268 = pneg %p59
        $region18: #{tpu_custom_call.1} parent=15 // pred_check_branch
          %270 = sbr.rel (%p268) target = $region20
        $region19: #{tpu_custom_call.1} parent=15 // pred_region
          %s271 = sand.u32 %s49, 1
          %s272 = scalar_lea.sflag [#allocation3], %s271
          %s273 = sand.u32 %s49, 1
          %s274 = smul.addr %s273, 1024
          %s275 = scalar_lea.vmem [#allocation2], %s274
          %s276 = smul.u32 32, %s32
          %s277 = smul.u32 4, %s33
          %s279 = ssub.s32 16384, 16384
          %280 = vsyncadd %s272, %s279
          %s281 = smul.addr %s276, 8
          %s282 = sadd.s32 %s277, %s281
          %s283 = smul.addr %s282, 128
          %s284 = scalar_lea.hbm %s0, %s283
          %s285 = sshll.u32 %s275, 4
          %s286 = int_to_ptr.vmem [resolvable:$true] %s285
          %291 = dma.hbm_to_vmem [thread:$0]  %s284, 16384, %s286, %s272, 1024, 512, 32
        $region20: #{tpu_custom_call.1} parent=15 // pred_fallthru
          _
        // Predicated region
        $region21: #{tpu_custom_call.1} parent=15 // pred_check
          %p292 = pneg %p85
        $region22: #{tpu_custom_call.1} parent=15 // pred_check_branch
          %294 = sbr.rel (%p292) target = $region24
        $region23: #{tpu_custom_call.1} parent=15 // pred_region
          %s295 = smul.u32 32, %s32
          %p296 = scmp.lt.s32.totalorder %s295, 63
          %s297 = scalar_select %p296, %s295, 63
          %s298 = smul.addr %s297, 8
          %s299 = scalar_lea.vmem %s1, %s298
          %s300 = smul.u32 32, %s32
        $region24: #{tpu_custom_call.1} parent=15 // pred_fallthru
          _
        // Predicated region
        $region25: #{tpu_custom_call.1} parent=15 // pred_check
          %p301 = pneg %p111
        $region26: #{tpu_custom_call.1} parent=15 // pred_check_branch
          %303 = sbr.rel (%p301) target = $region28
        $region27: #{tpu_custom_call.1} parent=15 // pred_region
          %s304 = sand.u32 %s25, 1
          %s305 = scalar_lea.sflag [#allocation6], %s304
          %s306 = sand.u32 %s101, 1
          %s307 = smul.addr %s306, 32
          %s308 = scalar_lea.vmem [#allocation5], %s307
          %s309 = smul.u32 4, %s33
          %s311 = ssub.s32 512, 512
          %312 = vsyncadd %s305, %s311
          %s313 = smul.addr %s309, 128
          %s314 = scalar_lea.hbm %s2, %s313
          %s316 = sshll.u32 %s308, 4
          %s317 = int_to_ptr.vmem [resolvable:$true] %s316
          %319 = dma.hbm_to_vmem [thread:$0]  %s314, 512, %s317, %s305
        $region28: #{tpu_custom_call.1} parent=15 // pred_fallthru
          _
        // Predicated region
        $region29: #{tpu_custom_call.1} parent=15 // pred_check
          %p320 = pneg %p137
        $region30: #{tpu_custom_call.1} parent=15 // pred_check_branch
          %322 = sbr.rel (%p320) target = $region32
        $region31: #{tpu_custom_call.1} parent=15 // pred_region
          %s323 = smul.u32 32, %s32
          %p324 = scmp.lt.s32.totalorder %s323, 63
          %s325 = scalar_select %p324, %s323, 63
          %s326 = smul.addr %s325, 8
          %s327 = scalar_lea.vmem %s3, %s326
          %s328 = smul.u32 32, %s32
        $region32: #{tpu_custom_call.1} parent=15 // pred_fallthru
          _
        // Predicated region
        $region33: #{tpu_custom_call.1} parent=15 // pred_check
          %p329 = pneg %p163
        $region34: #{tpu_custom_call.1} parent=15 // pred_check_branch
          %331 = sbr.rel (%p329) target = $region36
        $region35: #{tpu_custom_call.1} parent=15 // pred_region
          %s332 = sand.u32 %s25, 1
          %s333 = scalar_lea.sflag [#allocation6], %s332
          %s334 = sand.u32 %s153, 1
          %s335 = smul.addr %s334, 32
          %s336 = scalar_lea.vmem [#allocation7], %s335
          %s337 = smul.u32 4, %s33
          %s339 = ssub.s32 512, 512
          %340 = vsyncadd %s333, %s339
          %s341 = smul.addr %s337, 128
          %s342 = scalar_lea.hbm %s4, %s341
          %s344 = sshll.u32 %s336, 4
          %s345 = int_to_ptr.vmem [resolvable:$true] %s344
          %347 = dma.hbm_to_vmem [thread:$0]  %s342, 512, %s345, %s333
        $region36: #{tpu_custom_call.1} parent=15 // pred_fallthru
          _
        // Predicated region
        $region37: #{tpu_custom_call.1} parent=15 // pred_check
          %p348 = pneg %p189
        $region38: #{tpu_custom_call.1} parent=15 // pred_check_branch
          %350 = sbr.rel (%p348) target = $region40
        $region39: #{tpu_custom_call.1} parent=15 // pred_region
          %s351 = smul.u32 32, %s32
          %p352 = scmp.lt.s32.totalorder %s351, 63
          %s353 = scalar_select %p352, %s351, 63
          %s354 = smul.addr %s353, 8
          %s355 = scalar_lea.vmem %s5, %s354
          %s356 = smul.u32 32, %s32
        $region40: #{tpu_custom_call.1} parent=15 // pred_fallthru
          _
        // Predicated region
        $region41: #{tpu_custom_call.1} parent=15 // pred_check
          %p357 = pneg %p215
        $region42: #{tpu_custom_call.1} parent=15 // pred_check_branch
          %359 = sbr.rel (%p357) target = $region44
        $region43: #{tpu_custom_call.1} parent=15 // pred_region
          %s360 = sand.u32 %s205, 1
          %s361 = scalar_lea.sflag [#allocation9], %s360
          %s362 = sand.u32 %s205, 1
          %s363 = smul.addr %s362, 4
          %s364 = scalar_lea.vmem [#allocation8], %s363
          %s365 = smul.u32 4, %s33
          %s367 = ssub.s32 64, 64
          %368 = vsyncadd %s361, %s367
          %s369 = smul.addr %s365, 16
          %s370 = scalar_lea.hbm %s6, %s369
          %s372 = sshll.u32 %s364, 4
          %s373 = int_to_ptr.vmem [resolvable:$true] %s372
          %375 = dma.hbm_to_vmem [thread:$0]  %s370, 64, %s373, %s361
        $region44: #{tpu_custom_call.1} parent=15 // pred_fallthru
          _
      $region16: #{tpu_custom_call.1} parent=5 // pred_fallthru
        _
      %p376 = scmp.le.s32.totalorder 1, %s25
      %p377 = scmp.lt.s32.totalorder %s25, 5
      %p378 = pnand %p376, %p377
      %p379 = pneg %p378
      // Predicated region
      $region45: #{tpu_custom_call.1} parent=5 // pred_check
        _
      $region46: #{tpu_custom_call.1} parent=5 // pred_check_branch
        %381 = sbr.rel (%p378) target = $region48
      $region47: #{tpu_custom_call.1} parent=5 // pred_region
        %s382 = ssub.s32 %s25, 1
        %s383 = sand.u32 %s52, 1
        %s384 = scalar_lea.sflag [#allocation3], %s383
        %s385 = sand.u32 %s52, 1
        %s386 = smul.addr %s385, 1024
        %s387 = scalar_lea.vmem [#allocation2], %s386
        // Predicated region
        $region49: #{tpu_custom_call.1} parent=47 // pred_check
          %p388 = pneg %p65
        $region50: #{tpu_custom_call.1} parent=47 // pred_check_branch
          %390 = sbr.rel (%p388) target = $region52
        $region51: #{tpu_custom_call.1} parent=47 // pred_region
          %391 = dma.done %s384, 16384
        $region52: #{tpu_custom_call.1} parent=47 // pred_fallthru
          _
        %s392 = sand.u32 %s30, 1
        %s393 = scalar_lea.sflag [#allocation6], %s392
        %s394 = sand.u32 %s104, 1
        %s395 = smul.addr %s394, 32
        %s396 = scalar_lea.vmem [#allocation5], %s395
        // Predicated region
        $region53: #{tpu_custom_call.1} parent=47 // pred_check
          %p397 = pneg %p117
        $region54: #{tpu_custom_call.1} parent=47 // pred_check_branch
          %399 = sbr.rel (%p397) target = $region56
        $region55: #{tpu_custom_call.1} parent=47 // pred_region
          %400 = dma.done %s393, 512
        $region56: #{tpu_custom_call.1} parent=47 // pred_fallthru
          _
        %s401 = sand.u32 %s30, 1
        %s402 = scalar_lea.sflag [#allocation6], %s401
        %s403 = sand.u32 %s156, 1
        %s404 = smul.addr %s403, 32
        %s405 = scalar_lea.vmem [#allocation7], %s404
        // Predicated region
        $region57: #{tpu_custom_call.1} parent=47 // pred_check
          %p406 = pneg %p169
        $region58: #{tpu_custom_call.1} parent=47 // pred_check_branch
          %408 = sbr.rel (%p406) target = $region60
        $region59: #{tpu_custom_call.1} parent=47 // pred_region
          %409 = dma.done %s402, 512
        $region60: #{tpu_custom_call.1} parent=47 // pred_fallthru
          _
        %s410 = sand.u32 %s208, 1
        %s411 = scalar_lea.sflag [#allocation9], %s410
        %s412 = sand.u32 %s208, 1
        %s413 = smul.addr %s412, 4
        %s414 = scalar_lea.vmem [#allocation8], %s413
        // Predicated region
        $region61: #{tpu_custom_call.1} parent=47 // pred_check
          %p415 = pneg %p221
        $region62: #{tpu_custom_call.1} parent=47 // pred_check_branch
          %417 = sbr.rel (%p415) target = $region64
        $region63: #{tpu_custom_call.1} parent=47 // pred_region
          %418 = dma.done %s411, 64
        $region64: #{tpu_custom_call.1} parent=47 // pred_fallthru
          _
        %s419 = sand.u32 %s52, 1
        %s420 = scalar_lea.sflag [#allocation3], %s419
        %s421 = sand.u32 %s52, 1
        %s422 = smul.addr %s421, 1024
        %s423 = scalar_lea.vmem [#allocation2], %s422
        %p424 = pneg %p65
        %p425 = pneg %p62
        %s426 = smul.u32 32, %s34
        %p427 = scmp.lt.s32.totalorder %s426, 63
        %s428 = scalar_select %p427, %s426, 63
        %s429 = smul.addr %s428, 8
        %s430 = scalar_lea.vmem %s1, %s429
        %p431 = pneg %p91
        %p432 = pneg %p88
        %s433 = sand.u32 %s30, 1
        %s434 = scalar_lea.sflag [#allocation6], %s433
        %s435 = sand.u32 %s104, 1
        %s436 = smul.addr %s435, 32
        %s437 = scalar_lea.vmem [#allocation5], %s436
        %p438 = pneg %p117
        %p439 = pneg %p114
        %s440 = smul.u32 32, %s34
        %p441 = scmp.lt.s32.totalorder %s440, 63
        %s442 = scalar_select %p441, %s440, 63
        %s443 = smul.addr %s442, 8
        %s444 = scalar_lea.vmem %s3, %s443
        %p445 = pneg %p143
        %p446 = pneg %p140
        %s447 = sand.u32 %s30, 1
        %s448 = scalar_lea.sflag [#allocation6], %s447
        %s449 = sand.u32 %s156, 1
        %s450 = smul.addr %s449, 32
        %s451 = scalar_lea.vmem [#allocation7], %s450
        %p452 = pneg %p169
        %p453 = pneg %p166
        %s454 = smul.u32 32, %s34
        %p455 = scmp.lt.s32.totalorder %s454, 63
        %s456 = scalar_select %p455, %s454, 63
        %s457 = smul.addr %s456, 8
        %s458 = scalar_lea.vmem %s5, %s457
        %p459 = pneg %p195
        %p460 = pneg %p192
        %s461 = sand.u32 %s208, 1
        %s462 = scalar_lea.sflag [#allocation9], %s461
        %s463 = sand.u32 %s208, 1
        %s464 = smul.addr %s463, 4
        %s465 = scalar_lea.vmem [#allocation8], %s464
        %p466 = pneg %p221
        %p467 = pneg %p218
        %p468 = pneg %p249
        %p469 = pneg %p246
        %s470 = sand.u32 %s236, 1
        %s471 = scalar_lea.sflag [#allocation4], %s470
        %s472 = sand.u32 %s236, 1
        %s473 = smul.addr %s472, 1024
        %s474 = scalar_lea.vmem [#allocation10], %s473
        %s475 = smul.u32 32, %s34
        %s476 = smul.u32 4, %s35
        %s477 = smul.u32 32, %s34
        %p478 = scmp.lt.s32.totalorder %s477, 63
        %s479 = scalar_select %p478, %s477, 63
        %s480 = smul.addr %s479, 8
        %s481 = scalar_lea.vmem %s1, %s480
        %s482 = smul.u32 32, %s34
        %s483 = smul.u32 4, %s35
        %s484 = smul.u32 32, %s34
        %p485 = scmp.lt.s32.totalorder %s484, 63
        %s486 = scalar_select %p485, %s484, 63
        %s487 = smul.addr %s486, 8
        %s488 = scalar_lea.vmem %s3, %s487
        %s489 = smul.u32 32, %s34
        %s490 = smul.u32 4, %s35
        %s491 = smul.u32 32, %s34
        %p492 = scmp.lt.s32.totalorder %s491, 63
        %s493 = scalar_select %p492, %s491, 63
        %s494 = smul.addr %s493, 8
        %s495 = scalar_lea.vmem %s5, %s494
        %s496 = smul.u32 32, %s34
        %s497 = smul.u32 4, %s35
        %s498 = smul.u32 32, %s34
        %s499 = smul.u32 4, %s35
        %v500 = vld [vmem:[%s387] sm:$0xff]
        %v501 = vld [vmem:[%s387 + $0x8] sm:$0xff]
        %v502 = vld [vmem:[%s387 + $0x10] sm:$0xff]
        %v503 = vld [vmem:[%s387 + $0x18] sm:$0xff]
        %v504 = vld [vmem:[%s387 + $0x20] sm:$0xff]
        %v505 = vld [vmem:[%s387 + $0x28] sm:$0xff]
        %v506 = vld [vmem:[%s387 + $0x30] sm:$0xff]
        %v507 = vld [vmem:[%s387 + $0x38] sm:$0xff]
        %v508 = vld [vmem:[%s387 + $0x40] sm:$0xff]
        %v509 = vld [vmem:[%s387 + $0x48] sm:$0xff]
        %v510 = vld [vmem:[%s387 + $0x50] sm:$0xff]
        %v511 = vld [vmem:[%s387 + $0x58] sm:$0xff]
        %v512 = vld [vmem:[%s387 + $0x60] sm:$0xff]
        %v513 = vld [vmem:[%s387 + $0x68] sm:$0xff]
        %v514 = vld [vmem:[%s387 + $0x70] sm:$0xff]
        %v515 = vld [vmem:[%s387 + $0x78] sm:$0xff]
        %v516 = vld [vmem:[%s387 + $0x80] sm:$0xff]
        %v517 = vld [vmem:[%s387 + $0x88] sm:$0xff]
        %v518 = vld [vmem:[%s387 + $0x90] sm:$0xff]
        %v519 = vld [vmem:[%s387 + $0x98] sm:$0xff]
        %v520 = vld [vmem:[%s387 + $0xa0] sm:$0xff]
        %v521 = vld [vmem:[%s387 + $0xa8] sm:$0xff]
        %v522 = vld [vmem:[%s387 + $0xb0] sm:$0xff]
        %v523 = vld [vmem:[%s387 + $0xb8] sm:$0xff]
        %v524 = vld [vmem:[%s387 + $0xc0] sm:$0xff]
        %v525 = vld [vmem:[%s387 + $0xc8] sm:$0xff]
        %v526 = vld [vmem:[%s387 + $0xd0] sm:$0xff]
        %v527 = vld [vmem:[%s387 + $0xd8] sm:$0xff]
        %v528 = vld [vmem:[%s387 + $0xe0] sm:$0xff]
        %v529 = vld [vmem:[%s387 + $0xe8] sm:$0xff]
        %v530 = vld [vmem:[%s387 + $0xf0] sm:$0xff]
        %v531 = vld [vmem:[%s387 + $0xf8] sm:$0xff]
        %v532 = vld [vmem:[%s387 + $0x100] sm:$0xff]
        %v533 = vld [vmem:[%s387 + $0x108] sm:$0xff]
        %v534 = vld [vmem:[%s387 + $0x110] sm:$0xff]
        %v535 = vld [vmem:[%s387 + $0x118] sm:$0xff]
        %v536 = vld [vmem:[%s387 + $0x120] sm:$0xff]
        %v537 = vld [vmem:[%s387 + $0x128] sm:$0xff]
        %v538 = vld [vmem:[%s387 + $0x130] sm:$0xff]
        %v539 = vld [vmem:[%s387 + $0x138] sm:$0xff]
        %v540 = vld [vmem:[%s387 + $0x140] sm:$0xff]
        %v541 = vld [vmem:[%s387 + $0x148] sm:$0xff]
        %v542 = vld [vmem:[%s387 + $0x150] sm:$0xff]
        %v543 = vld [vmem:[%s387 + $0x158] sm:$0xff]
        %v544 = vld [vmem:[%s387 + $0x160] sm:$0xff]
        %v545 = vld [vmem:[%s387 + $0x168] sm:$0xff]
        %v546 = vld [vmem:[%s387 + $0x170] sm:$0xff]
        %v547 = vld [vmem:[%s387 + $0x178] sm:$0xff]
        %v548 = vld [vmem:[%s387 + $0x180] sm:$0xff]
        %v549 = vld [vmem:[%s387 + $0x188] sm:$0xff]
        %v550 = vld [vmem:[%s387 + $0x190] sm:$0xff]
        %v551 = vld [vmem:[%s387 + $0x198] sm:$0xff]
        %v552 = vld [vmem:[%s387 + $0x1a0] sm:$0xff]
        %v553 = vld [vmem:[%s387 + $0x1a8] sm:$0xff]
        %v554 = vld [vmem:[%s387 + $0x1b0] sm:$0xff]
        %v555 = vld [vmem:[%s387 + $0x1b8] sm:$0xff]
        %v556 = vld [vmem:[%s387 + $0x1c0] sm:$0xff]
        %v557 = vld [vmem:[%s387 + $0x1c8] sm:$0xff]
        %v558 = vld [vmem:[%s387 + $0x1d0] sm:$0xff]
        %v559 = vld [vmem:[%s387 + $0x1d8] sm:$0xff]
        %v560 = vld [vmem:[%s387 + $0x1e0] sm:$0xff]
        %v561 = vld [vmem:[%s387 + $0x1e8] sm:$0xff]
        %v562 = vld [vmem:[%s387 + $0x1f0] sm:$0xff]
        %v563 = vld [vmem:[%s387 + $0x1f8] sm:$0xff]
        %v564 = vld [vmem:[%s387 + $0x200] sm:$0xff]
        %v565 = vld [vmem:[%s387 + $0x208] sm:$0xff]
        %v566 = vld [vmem:[%s387 + $0x210] sm:$0xff]
        %v567 = vld [vmem:[%s387 + $0x218] sm:$0xff]
        %v568 = vld [vmem:[%s387 + $0x220] sm:$0xff]
        %v569 = vld [vmem:[%s387 + $0x228] sm:$0xff]
        %v570 = vld [vmem:[%s387 + $0x230] sm:$0xff]
        %v571 = vld [vmem:[%s387 + $0x238] sm:$0xff]
        %v572 = vld [vmem:[%s387 + $0x240] sm:$0xff]
        %v573 = vld [vmem:[%s387 + $0x248] sm:$0xff]
        %v574 = vld [vmem:[%s387 + $0x250] sm:$0xff]
        %v575 = vld [vmem:[%s387 + $0x258] sm:$0xff]
        %v576 = vld [vmem:[%s387 + $0x260] sm:$0xff]
        %v577 = vld [vmem:[%s387 + $0x268] sm:$0xff]
        %v578 = vld [vmem:[%s387 + $0x270] sm:$0xff]
        %v579 = vld [vmem:[%s387 + $0x278] sm:$0xff]
        %v580 = vld [vmem:[%s387 + $0x280] sm:$0xff]
        %v581 = vld [vmem:[%s387 + $0x288] sm:$0xff]
        %v582 = vld [vmem:[%s387 + $0x290] sm:$0xff]
        %v583 = vld [vmem:[%s387 + $0x298] sm:$0xff]
        %v584 = vld [vmem:[%s387 + $0x2a0] sm:$0xff]
        %v585 = vld [vmem:[%s387 + $0x2a8] sm:$0xff]
        %v586 = vld [vmem:[%s387 + $0x2b0] sm:$0xff]
        %v587 = vld [vmem:[%s387 + $0x2b8] sm:$0xff]
        %v588 = vld [vmem:[%s387 + $0x2c0] sm:$0xff]
        %v589 = vld [vmem:[%s387 + $0x2c8] sm:$0xff]
        %v590 = vld [vmem:[%s387 + $0x2d0] sm:$0xff]
        %v591 = vld [vmem:[%s387 + $0x2d8] sm:$0xff]
        %v592 = vld [vmem:[%s387 + $0x2e0] sm:$0xff]
        %v593 = vld [vmem:[%s387 + $0x2e8] sm:$0xff]
        %v594 = vld [vmem:[%s387 + $0x2f0] sm:$0xff]
        %v595 = vld [vmem:[%s387 + $0x2f8] sm:$0xff]
        %v596 = vld [vmem:[%s387 + $0x300] sm:$0xff]
        %v597 = vld [vmem:[%s387 + $0x308] sm:$0xff]
        %v598 = vld [vmem:[%s387 + $0x310] sm:$0xff]
        %v599 = vld [vmem:[%s387 + $0x318] sm:$0xff]
        %v600 = vld [vmem:[%s387 + $0x320] sm:$0xff]
        %v601 = vld [vmem:[%s387 + $0x328] sm:$0xff]
        %v602 = vld [vmem:[%s387 + $0x330] sm:$0xff]
        %v603 = vld [vmem:[%s387 + $0x338] sm:$0xff]
        %v604 = vld [vmem:[%s387 + $0x340] sm:$0xff]
        %v605 = vld [vmem:[%s387 + $0x348] sm:$0xff]
        %v606 = vld [vmem:[%s387 + $0x350] sm:$0xff]
        %v607 = vld [vmem:[%s387 + $0x358] sm:$0xff]
        %v608 = vld [vmem:[%s387 + $0x360] sm:$0xff]
        %v609 = vld [vmem:[%s387 + $0x368] sm:$0xff]
        %v610 = vld [vmem:[%s387 + $0x370] sm:$0xff]
        %v611 = vld [vmem:[%s387 + $0x378] sm:$0xff]
        %v612 = vld [vmem:[%s387 + $0x380] sm:$0xff]
        %v613 = vld [vmem:[%s387 + $0x388] sm:$0xff]
        %v614 = vld [vmem:[%s387 + $0x390] sm:$0xff]
        %v615 = vld [vmem:[%s387 + $0x398] sm:$0xff]
        %v616 = vld [vmem:[%s387 + $0x3a0] sm:$0xff]
        %v617 = vld [vmem:[%s387 + $0x3a8] sm:$0xff]
        %v618 = vld [vmem:[%s387 + $0x3b0] sm:$0xff]
        %v619 = vld [vmem:[%s387 + $0x3b8] sm:$0xff]
        %v620 = vld [vmem:[%s387 + $0x3c0] sm:$0xff]
        %v621 = vld [vmem:[%s387 + $0x3c8] sm:$0xff]
        %v622 = vld [vmem:[%s387 + $0x3d0] sm:$0xff]
        %v623 = vld [vmem:[%s387 + $0x3d8] sm:$0xff]
        %v624 = vld [vmem:[%s387 + $0x3e0] sm:$0xff]
        %v625 = vld [vmem:[%s387 + $0x3e8] sm:$0xff]
        %v626 = vld [vmem:[%s387 + $0x3f0] sm:$0xff]
        %v627 = vld [vmem:[%s387 + $0x3f8] sm:$0xff]
        %v628 = vld [vmem:[%s481] sm:$0xff]
        %v629 = vld [vmem:[%s481 + $0x8] sm:$0xff]
        %v630 = vld [vmem:[%s481 + $0x10] sm:$0xff]
        %v631 = vld [vmem:[%s481 + $0x18] sm:$0xff]
        %v632 = vld [vmem:[%s481 + $0x20] sm:$0xff]
        %v633 = vld [vmem:[%s481 + $0x28] sm:$0xff]
        %v634 = vld [vmem:[%s481 + $0x30] sm:$0xff]
        %v635 = vld [vmem:[%s481 + $0x38] sm:$0xff]
        %v636 = vld [vmem:[%s481 + $0x40] sm:$0xff]
        %v637 = vld [vmem:[%s481 + $0x48] sm:$0xff]
        %v638 = vld [vmem:[%s481 + $0x50] sm:$0xff]
        %v639 = vld [vmem:[%s481 + $0x58] sm:$0xff]
        %v640 = vld [vmem:[%s481 + $0x60] sm:$0xff]
        %v641 = vld [vmem:[%s481 + $0x68] sm:$0xff]
        %v642 = vld [vmem:[%s481 + $0x70] sm:$0xff]
        %v643 = vld [vmem:[%s481 + $0x78] sm:$0xff]
        %v644 = vld [vmem:[%s481 + $0x80] sm:$0xff]
        %v645 = vld [vmem:[%s481 + $0x88] sm:$0xff]
        %v646 = vld [vmem:[%s481 + $0x90] sm:$0xff]
        %v647 = vld [vmem:[%s481 + $0x98] sm:$0xff]
        %v648 = vld [vmem:[%s481 + $0xa0] sm:$0xff]
        %v649 = vld [vmem:[%s481 + $0xa8] sm:$0xff]
        %v650 = vld [vmem:[%s481 + $0xb0] sm:$0xff]
        %v651 = vld [vmem:[%s481 + $0xb8] sm:$0xff]
        %v652 = vld [vmem:[%s481 + $0xc0] sm:$0xff]
        %v653 = vld [vmem:[%s481 + $0xc8] sm:$0xff]
        %v654 = vld [vmem:[%s481 + $0xd0] sm:$0xff]
        %v655 = vld [vmem:[%s481 + $0xd8] sm:$0xff]
        %v656 = vld [vmem:[%s481 + $0xe0] sm:$0xff]
        %v657 = vld [vmem:[%s481 + $0xe8] sm:$0xff]
        %v658 = vld [vmem:[%s481 + $0xf0] sm:$0xff]
        %v659 = vld [vmem:[%s481 + $0xf8] sm:$0xff]
        %v660 = vld [vmem:[%s396] sm:$0xff]
        %v661 = vld [vmem:[%s396 + $0x8] sm:$0xff]
        %v662 = vld [vmem:[%s396 + $0x10] sm:$0xff]
        %v663 = vld [vmem:[%s396 + $0x18] sm:$0xff]
        %vm664 = vcmask 64512
        %v666 = vsel %vm664, %v628, 0
        %v669 = vsel %vm664, %v629, 0
        %v672 = vsel %vm664, %v630, 0
        %v675 = vsel %vm664, %v631, 0
        %v678 = vsel %vm664, %v632, 0
        %v681 = vsel %vm664, %v633, 0
        %v684 = vsel %vm664, %v634, 0
        %v687 = vsel %vm664, %v635, 0
        %v690 = vsel %vm664, %v636, 0
        %v693 = vsel %vm664, %v637, 0
        %v696 = vsel %vm664, %v638, 0
        %v699 = vsel %vm664, %v639, 0
        %v702 = vsel %vm664, %v640, 0
        %v705 = vsel %vm664, %v641, 0
        %v708 = vsel %vm664, %v642, 0
        %v711 = vsel %vm664, %v643, 0
        %v714 = vsel %vm664, %v644, 0
        %v717 = vsel %vm664, %v645, 0
        %v720 = vsel %vm664, %v646, 0
        %v723 = vsel %vm664, %v647, 0
        %v726 = vsel %vm664, %v648, 0
        %v729 = vsel %vm664, %v649, 0
        %v732 = vsel %vm664, %v650, 0
        %v735 = vsel %vm664, %v651, 0
        %v738 = vsel %vm664, %v652, 0
        %v741 = vsel %vm664, %v653, 0
        %v744 = vsel %vm664, %v654, 0
        %v747 = vsel %vm664, %v655, 0
        %v750 = vsel %vm664, %v656, 0
        %v753 = vsel %vm664, %v657, 0
        %v756 = vsel %vm664, %v658, 0
        %v759 = vsel %vm664, %v659, 0
        %761 = vmatprep.subr.mxu0 %v661
        %762 = vmatpush1.msra.mxu0 %v660
        %763 = vmatprep.subr.mxu0 0.0
        %764 = vmatpush1.msra.mxu0 0.0
        %765 = vmatprep.subr.mxu0 0.0
        %766 = vmatpush1.msra.mxu0 0.0
        %767 = vmatprep.subr.mxu0 0.0
        %768 = vmatpush1.msra.mxu0 0.0
        %769 = vmatprep.subr.mxu0 0.0
        %770 = vmatpush1.msra.mxu0 0.0
        %771 = vmatprep.subr.mxu0 0.0
        %772 = vmatpush1.msra.mxu0 0.0
        %773 = vmatprep.subr.mxu0 0.0
        %774 = vmatpush1.msra.mxu0 0.0
        %775 = vmatprep.subr.mxu0 0.0
        %776 = vmatpush1.msra.mxu0 0.0
        %777 = vmatprep.subr.mxu0 0.0
        %778 = vmatpush1.msra.mxu0 0.0
        %779 = vmatprep.subr.mxu0 0.0
        %780 = vmatpush1.msra.mxu0 0.0
        %781 = vmatprep.subr.mxu0 0.0
        %782 = vmatpush1.msra.mxu0 0.0
        %783 = vmatprep.subr.mxu0 0.0
        %784 = vmatpush1.msra.mxu0 0.0
        %785 = vmatprep.subr.mxu0 0.0
        %786 = vmatpush1.msra.mxu0 0.0
        %787 = vmatprep.subr.mxu0 0.0
        %788 = vmatpush1.msra.mxu0 0.0
        %789 = vmatprep.subr.mxu0 0.0
        %790 = vmatpush1.msra.mxu0 0.0
        %791 = vmatprep.subr.mxu0 0.0
        %792 = vmatpush1.msra.mxu0 0.0
        %793 = vmatprep.subr.mxu0 0.0
        %794 = vmatpush1.msra.mxu0 0.0
        %795 = vmatprep.subr.mxu0 0.0
        %796 = vmatpush1.msra.mxu0 0.0
        %797 = vmatprep.subr.mxu0 0.0
        %798 = vmatpush1.msra.mxu0 0.0
        %799 = vmatprep.subr.mxu0 0.0
        %800 = vmatpush1.msra.mxu0 0.0
        %801 = vmatprep.subr.mxu0 0.0
        %802 = vmatpush1.msra.mxu0 0.0
        %803 = vmatprep.subr.mxu0 0.0
        %804 = vmatpush1.msra.mxu0 0.0
        %805 = vmatprep.subr.mxu0 0.0
        %806 = vmatpush1.msra.mxu0 0.0
        %807 = vmatprep.subr.mxu0 0.0
        %808 = vmatpush1.msra.mxu0 0.0
        %809 = vmatprep.subr.mxu0 0.0
        %810 = vmatpush1.msra.mxu0 0.0
        %811 = vmatprep.subr.mxu0 0.0
        %812 = vmatpush1.msra.mxu0 0.0
        %813 = vmatprep.subr.mxu0 0.0
        %814 = vmatpush1.msra.mxu0 0.0
        %815 = vmatprep.subr.mxu0 0.0
        %816 = vmatpush1.msra.mxu0 0.0
        %817 = vmatprep.subr.mxu0 0.0
        %818 = vmatpush1.msra.mxu0 0.0
        %819 = vmatprep.subr.mxu0 0.0
        %820 = vmatpush1.msra.mxu0 0.0
        %821 = vmatprep.subr.mxu0 0.0
        %822 = vmatpush1.msra.mxu0 0.0
        %823 = vmatprep.subr.mxu0 0.0
        %824 = vmatpush1.msra.mxu0 0.0
        %825 = vmatprep.mubr.f32.mxu0 0.0
        %826 = vmatmul.mubr.f32.gmra.mrb[0].mxu0 %v666
        %v827 = vpop.f32.mrb[0].mxu0
        %v828 = vadd.f32 0.0, %v827
        %v829 = vpop.f32.mrb[0].mxu0
        %v830 = vadd.f32 0.0, %v829
        %831 = vmatprep.mubr.f32.mxu0 0.0
        %832 = vmatmul.mubr.f32.gmra.mrb[0].mxu0 %v669
        %v833 = vpop.f32.mrb[0].mxu0
        %v834 = vadd.f32 0.0, %v833
        %v835 = vpop.f32.mrb[0].mxu0
        %v836 = vadd.f32 0.0, %v835
        %837 = vmatprep.mubr.f32.mxu0 0.0
        %838 = vmatmul.mubr.f32.gmra.mrb[0].mxu0 %v672
        %v839 = vpop.f32.mrb[0].mxu0
        %v840 = vadd.f32 0.0, %v839
        %v841 = vpop.f32.mrb[0].mxu0
        %v842 = vadd.f32 0.0, %v841
        %843 = vmatprep.mubr.f32.mxu0 0.0
        %844 = vmatmul.mubr.f32.gmra.mrb[0].mxu0 %v675
        %v845 = vpop.f32.mrb[0].mxu0
        %v846 = vadd.f32 0.0, %v845
        %v847 = vpop.f32.mrb[0].mxu0
        %v848 = vadd.f32 0.0, %v847
        %849 = vmatprep.mubr.f32.mxu0 0.0
        %850 = vmatmul.mubr.f32.gmra.mrb[0].mxu0 %v678
        %v851 = vpop.f32.mrb[0].mxu0
        %v852 = vadd.f32 0.0, %v851
        %v853 = vpop.f32.mrb[0].mxu0
        %v854 = vadd.f32 0.0, %v853
        %855 = vmatprep.mubr.f32.mxu0 0.0
        %856 = vmatmul.mubr.f32.gmra.mrb[0].mxu0 %v681
        %v857 = vpop.f32.mrb[0].mxu0
        %v858 = vadd.f32 0.0, %v857
        %v859 = vpop.f32.mrb[0].mxu0
        %v860 = vadd.f32 0.0, %v859
        %861 = vmatprep.mubr.f32.mxu0 0.0
        %862 = vmatmul.mubr.f32.gmra.mrb[0].mxu0 %v684
        %v863 = vpop.f32.mrb[0].mxu0
        %v864 = vadd.f32 0.0, %v863
        %v865 = vpop.f32.mrb[0].mxu0
        %v866 = vadd.f32 0.0, %v865
        %867 = vmatprep.mubr.f32.mxu0 0.0
        %868 = vmatmul.mubr.f32.gmra.mrb[0].mxu0 %v687
        %v869 = vpop.f32.mrb[0].mxu0
        %v870 = vadd.f32 0.0, %v869
        %v871 = vpop.f32.mrb[0].mxu0
        %v872 = vadd.f32 0.0, %v871
        %873 = vmatprep.mubr.f32.mxu0 0.0
        %874 = vmatmul.mubr.f32.gmra.mrb[0].mxu0 %v690
        %v875 = vpop.f32.mrb[0].mxu0
        %v876 = vadd.f32 0.0, %v875
        %v877 = vpop.f32.mrb[0].mxu0
        %v878 = vadd.f32 0.0, %v877
        %879 = vmatprep.mubr.f32.mxu0 0.0
        %880 = vmatmul.mubr.f32.gmra.mrb[0].mxu0 %v693
        %v881 = vpop.f32.mrb[0].mxu0
        %v882 = vadd.f32 0.0, %v881
        %v883 = vpop.f32.mrb[0].mxu0
        %v884 = vadd.f32 0.0, %v883
        %885 = vmatprep.mubr.f32.mxu0 0.0
        %886 = vmatmul.mubr.f32.gmra.mrb[0].mxu0 %v696
        %v887 = vpop.f32.mrb[0].mxu0
        %v888 = vadd.f32 0.0, %v887
        %v889 = vpop.f32.mrb[0].mxu0
        %v890 = vadd.f32 0.0, %v889
        %891 = vmatprep.mubr.f32.mxu0 0.0
        %892 = vmatmul.mubr.f32.gmra.mrb[0].mxu0 %v699
        %v893 = vpop.f32.mrb[0].mxu0
        %v894 = vadd.f32 0.0, %v893
        %v895 = vpop.f32.mrb[0].mxu0
        %v896 = vadd.f32 0.0, %v895
        %897 = vmatprep.mubr.f32.mxu0 0.0
        %898 = vmatmul.mubr.f32.gmra.mrb[0].mxu0 %v702
        %v899 = vpop.f32.mrb[0].mxu0
        %v900 = vadd.f32 0.0, %v899
        %v901 = vpop.f32.mrb[0].mxu0
        %v902 = vadd.f32 0.0, %v901
        %903 = vmatprep.mubr.f32.mxu0 0.0
        %904 = vmatmul.mubr.f32.gmra.mrb[0].mxu0 %v705
        %v905 = vpop.f32.mrb[0].mxu0
        %v906 = vadd.f32 0.0, %v905
        %v907 = vpop.f32.mrb[0].mxu0
        %v908 = vadd.f32 0.0, %v907
        %909 = vmatprep.mubr.f32.mxu0 0.0
        %910 = vmatmul.mubr.f32.gmra.mrb[0].mxu0 %v708
        %v911 = vpop.f32.mrb[0].mxu0
        %v912 = vadd.f32 0.0, %v911
        %v913 = vpop.f32.mrb[0].mxu0
        %v914 = vadd.f32 0.0, %v913
        %915 = vmatprep.mubr.f32.mxu0 0.0
        %916 = vmatmul.mubr.f32.gmra.mrb[0].mxu0 %v711
        %v917 = vpop.f32.mrb[0].mxu0
        %v918 = vadd.f32 0.0, %v917
        %v919 = vpop.f32.mrb[0].mxu0
        %v920 = vadd.f32 0.0, %v919
        %921 = vmatprep.mubr.f32.mxu0 0.0
        %922 = vmatmul.mubr.f32.gmra.mrb[0].mxu0 %v714
        %v923 = vpop.f32.mrb[0].mxu0
        %v924 = vadd.f32 0.0, %v923
        %v925 = vpop.f32.mrb[0].mxu0
        %v926 = vadd.f32 0.0, %v925
        %927 = vmatprep.mubr.f32.mxu0 0.0
        %928 = vmatmul.mubr.f32.gmra.mrb[0].mxu0 %v717
        %v929 = vpop.f32.mrb[0].mxu0
        %v930 = vadd.f32 0.0, %v929
        %v931 = vpop.f32.mrb[0].mxu0
        %v932 = vadd.f32 0.0, %v931
        %933 = vmatprep.mubr.f32.mxu0 0.0
        %934 = vmatmul.mubr.f32.gmra.mrb[0].mxu0 %v720
        %v935 = vpop.f32.mrb[0].mxu0
        %v936 = vadd.f32 0.0, %v935
        %v937 = vpop.f32.mrb[0].mxu0
        %v938 = vadd.f32 0.0, %v937
        %939 = vmatprep.mubr.f32.mxu0 0.0
        %940 = vmatmul.mubr.f32.gmra.mrb[0].mxu0 %v723
        %v941 = vpop.f32.mrb[0].mxu0
        %v942 = vadd.f32 0.0, %v941
        %v943 = vpop.f32.mrb[0].mxu0
        %v944 = vadd.f32 0.0, %v943
        %945 = vmatprep.mubr.f32.mxu0 0.0
        %946 = vmatmul.mubr.f32.gmra.mrb[0].mxu0 %v726
        %v947 = vpop.f32.mrb[0].mxu0
        %v948 = vadd.f32 0.0, %v947
        %v949 = vpop.f32.mrb[0].mxu0
        %v950 = vadd.f32 0.0, %v949
        %951 = vmatprep.mubr.f32.mxu0 0.0
        %952 = vmatmul.mubr.f32.gmra.mrb[0].mxu0 %v729
        %v953 = vpop.f32.mrb[0].mxu0
        %v954 = vadd.f32 0.0, %v953
        %v955 = vpop.f32.mrb[0].mxu0
        %v956 = vadd.f32 0.0, %v955
        %957 = vmatprep.mubr.f32.mxu0 0.0
        %958 = vmatmul.mubr.f32.gmra.mrb[0].mxu0 %v732
        %v959 = vpop.f32.mrb[0].mxu0
        %v960 = vadd.f32 0.0, %v959
        %v961 = vpop.f32.mrb[0].mxu0
        %v962 = vadd.f32 0.0, %v961
        %963 = vmatprep.mubr.f32.mxu0 0.0
        %964 = vmatmul.mubr.f32.gmra.mrb[0].mxu0 %v735
        %v965 = vpop.f32.mrb[0].mxu0
        %v966 = vadd.f32 0.0, %v965
        %v967 = vpop.f32.mrb[0].mxu0
        %v968 = vadd.f32 0.0, %v967
        %969 = vmatprep.mubr.f32.mxu0 0.0
        %970 = vmatmul.mubr.f32.gmra.mrb[0].mxu0 %v738
        %v971 = vpop.f32.mrb[0].mxu0
        %v972 = vadd.f32 0.0, %v971
        %v973 = vpop.f32.mrb[0].mxu0
        %v974 = vadd.f32 0.0, %v973
        %975 = vmatprep.mubr.f32.mxu0 0.0
        %976 = vmatmul.mubr.f32.gmra.mrb[0].mxu0 %v741
        %v977 = vpop.f32.mrb[0].mxu0
        %v978 = vadd.f32 0.0, %v977
        %v979 = vpop.f32.mrb[0].mxu0
        %v980 = vadd.f32 0.0, %v979
        %981 = vmatprep.mubr.f32.mxu0 0.0
        %982 = vmatmul.mubr.f32.gmra.mrb[0].mxu0 %v744
        %v983 = vpop.f32.mrb[0].mxu0
        %v984 = vadd.f32 0.0, %v983
        %v985 = vpop.f32.mrb[0].mxu0
        %v986 = vadd.f32 0.0, %v985
        %987 = vmatprep.mubr.f32.mxu0 0.0
        %988 = vmatmul.mubr.f32.gmra.mrb[0].mxu0 %v747
        %v989 = vpop.f32.mrb[0].mxu0
        %v990 = vadd.f32 0.0, %v989
        %v991 = vpop.f32.mrb[0].mxu0
        %v992 = vadd.f32 0.0, %v991
        %993 = vmatprep.mubr.f32.mxu0 0.0
        %994 = vmatmul.mubr.f32.gmra.mrb[0].mxu0 %v750
        %v995 = vpop.f32.mrb[0].mxu0
        %v996 = vadd.f32 0.0, %v995
        %v997 = vpop.f32.mrb[0].mxu0
        %v998 = vadd.f32 0.0, %v997
        %999 = vmatprep.mubr.f32.mxu0 0.0
        %1000 = vmatmul.mubr.f32.gmra.mrb[0].mxu0 %v753
        %v1001 = vpop.f32.mrb[0].mxu0
        %v1002 = vadd.f32 0.0, %v1001
        %v1003 = vpop.f32.mrb[0].mxu0
        %v1004 = vadd.f32 0.0, %v1003
        %1005 = vmatprep.mubr.f32.mxu0 0.0
        %1006 = vmatmul.mubr.f32.gmra.mrb[0].mxu0 %v756
        %v1007 = vpop.f32.mrb[0].mxu0
        %v1008 = vadd.f32 0.0, %v1007
        %v1009 = vpop.f32.mrb[0].mxu0
        %v1010 = vadd.f32 0.0, %v1009
        %1011 = vmatprep.mubr.f32.mxu0 0.0
        %1012 = vmatmul.mubr.f32.gmra.mrb[0].mxu0 %v759
        %v1013 = vpop.f32.mrb[0].mxu0
        %v1014 = vadd.f32 0.0, %v1013
        %v1015 = vpop.f32.mrb[0].mxu0
        %v1016 = vadd.f32 0.0, %v1015
        %1017 = vdwg.mxu0
        %1018 = vmatprep.subr.mxu0 %v663
        %1019 = vmatpush1.msra.mxu0 %v662
        %1020 = vmatprep.subr.mxu0 0.0
        %1021 = vmatpush1.msra.mxu0 0.0
        %1022 = vmatprep.subr.mxu0 0.0
        %1023 = vmatpush1.msra.mxu0 0.0
        %1024 = vmatprep.subr.mxu0 0.0
        %1025 = vmatpush1.msra.mxu0 0.0
        %1026 = vmatprep.subr.mxu0 0.0
        %1027 = vmatpush1.msra.mxu0 0.0
        %1028 = vmatprep.subr.mxu0 0.0
        %1029 = vmatpush1.msra.mxu0 0.0
        %1030 = vmatprep.subr.mxu0 0.0
        %1031 = vmatpush1.msra.mxu0 0.0
        %1032 = vmatprep.subr.mxu0 0.0
        %1033 = vmatpush1.msra.mxu0 0.0
        %1034 = vmatprep.subr.mxu0 0.0
        %1035 = vmatpush1.msra.mxu0 0.0
        %1036 = vmatprep.subr.mxu0 0.0
        %1037 = vmatpush1.msra.mxu0 0.0
        %1038 = vmatprep.subr.mxu0 0.0
        %1039 = vmatpush1.msra.mxu0 0.0
        %1040 = vmatprep.subr.mxu0 0.0
        %1041 = vmatpush1.msra.mxu0 0.0
        %1042 = vmatprep.subr.mxu0 0.0
        %1043 = vmatpush1.msra.mxu0 0.0
        %1044 = vmatprep.subr.mxu0 0.0
        %1045 = vmatpush1.msra.mxu0 0.0
        %1046 = vmatprep.subr.mxu0 0.0
        %1047 = vmatpush1.msra.mxu0 0.0
        %1048 = vmatprep.subr.mxu0 0.0
        %1049 = vmatpush1.msra.mxu0 0.0
        %1050 = vmatprep.subr.mxu0 0.0
        %1051 = vmatpush1.msra.mxu0 0.0
        %1052 = vmatprep.subr.mxu0 0.0
        %1053 = vmatpush1.msra.mxu0 0.0
        %1054 = vmatprep.subr.mxu0 0.0
        %1055 = vmatpush1.msra.mxu0 0.0
        %1056 = vmatprep.subr.mxu0 0.0
        %1057 = vmatpush1.msra.mxu0 0.0
        %1058 = vmatprep.subr.mxu0 0.0
        %1059 = vmatpush1.msra.mxu0 0.0
        %1060 = vmatprep.subr.mxu0 0.0
        %1061 = vmatpush1.msra.mxu0 0.0
        %1062 = vmatprep.subr.mxu0 0.0
        %1063 = vmatpush1.msra.mxu0 0.0
        %1064 = vmatprep.subr.mxu0 0.0
        %1065 = vmatpush1.msra.mxu0 0.0
        %1066 = vmatprep.subr.mxu0 0.0
        %1067 = vmatpush1.msra.mxu0 0.0
        %1068 = vmatprep.subr.mxu0 0.0
        %1069 = vmatpush1.msra.mxu0 0.0
        %1070 = vmatprep.subr.mxu0 0.0
        %1071 = vmatpush1.msra.mxu0 0.0
        %1072 = vmatprep.subr.mxu0 0.0
        %1073 = vmatpush1.msra.mxu0 0.0
        %1074 = vmatprep.subr.mxu0 0.0
        %1075 = vmatpush1.msra.mxu0 0.0
        %1076 = vmatprep.subr.mxu0 0.0
        %1077 = vmatpush1.msra.mxu0 0.0
        %1078 = vmatprep.subr.mxu0 0.0
        %1079 = vmatpush1.msra.mxu0 0.0
        %1080 = vmatprep.subr.mxu0 0.0
        %1081 = vmatpush1.msra.mxu0 0.0
        %1082 = vmatprep.mubr.f32.mxu0 0.0
        %1083 = vmatmul.mubr.f32.gmra.mrb[0].mxu0 %v666
        %v1084 = vpop.f32.mrb[0].mxu0
        %v1085 = vadd.f32 0.0, %v1084
        %v1086 = vpop.f32.mrb[0].mxu0
        %v1087 = vadd.f32 0.0, %v1086
        %1088 = vmatprep.mubr.f32.mxu0 0.0
        %1089 = vmatmul.mubr.f32.gmra.mrb[0].mxu0 %v669
        %v1090 = vpop.f32.mrb[0].mxu0
        %v1091 = vadd.f32 0.0, %v1090
        %v1092 = vpop.f32.mrb[0].mxu0
        %v1093 = vadd.f32 0.0, %v1092
        %1094 = vmatprep.mubr.f32.mxu0 0.0
        %1095 = vmatmul.mubr.f32.gmra.mrb[0].mxu0 %v672
        %v1096 = vpop.f32.mrb[0].mxu0
        %v1097 = vadd.f32 0.0, %v1096
        %v1098 = vpop.f32.mrb[0].mxu0
        %v1099 = vadd.f32 0.0, %v1098
        %1100 = vmatprep.mubr.f32.mxu0 0.0
        %1101 = vmatmul.mubr.f32.gmra.mrb[0].mxu0 %v675
        %v1102 = vpop.f32.mrb[0].mxu0
        %v1103 = vadd.f32 0.0, %v1102
        %v1104 = vpop.f32.mrb[0].mxu0
        %v1105 = vadd.f32 0.0, %v1104
        %1106 = vmatprep.mubr.f32.mxu0 0.0
        %1107 = vmatmul.mubr.f32.gmra.mrb[0].mxu0 %v678
        %v1108 = vpop.f32.mrb[0].mxu0
        %v1109 = vadd.f32 0.0, %v1108
        %v1110 = vpop.f32.mrb[0].mxu0
        %v1111 = vadd.f32 0.0, %v1110
        %1112 = vmatprep.mubr.f32.mxu0 0.0
        %1113 = vmatmul.mubr.f32.gmra.mrb[0].mxu0 %v681
        %v1114 = vpop.f32.mrb[0].mxu0
        %v1115 = vadd.f32 0.0, %v1114
        %v1116 = vpop.f32.mrb[0].mxu0
        %v1117 = vadd.f32 0.0, %v1116
        %1118 = vmatprep.mubr.f32.mxu0 0.0
        %1119 = vmatmul.mubr.f32.gmra.mrb[0].mxu0 %v684
        %v1120 = vpop.f32.mrb[0].mxu0
        %v1121 = vadd.f32 0.0, %v1120
        %v1122 = vpop.f32.mrb[0].mxu0
        %v1123 = vadd.f32 0.0, %v1122
        %1124 = vmatprep.mubr.f32.mxu0 0.0
        %1125 = vmatmul.mubr.f32.gmra.mrb[0].mxu0 %v687
        %v1126 = vpop.f32.mrb[0].mxu0
        %v1127 = vadd.f32 0.0, %v1126
        %v1128 = vpop.f32.mrb[0].mxu0
        %v1129 = vadd.f32 0.0, %v1128
        %1130 = vmatprep.mubr.f32.mxu0 0.0
        %1131 = vmatmul.mubr.f32.gmra.mrb[0].mxu0 %v690
        %v1132 = vpop.f32.mrb[0].mxu0
        %v1133 = vadd.f32 0.0, %v1132
        %v1134 = vpop.f32.mrb[0].mxu0
        %v1135 = vadd.f32 0.0, %v1134
        %1136 = vmatprep.mubr.f32.mxu0 0.0
        %1137 = vmatmul.mubr.f32.gmra.mrb[0].mxu0 %v693
        %v1138 = vpop.f32.mrb[0].mxu0
        %v1139 = vadd.f32 0.0, %v1138
        %v1140 = vpop.f32.mrb[0].mxu0
        %v1141 = vadd.f32 0.0, %v1140
        %1142 = vmatprep.mubr.f32.mxu0 0.0
        %1143 = vmatmul.mubr.f32.gmra.mrb[0].mxu0 %v696
        %v1144 = vpop.f32.mrb[0].mxu0
        %v1145 = vadd.f32 0.0, %v1144
        %v1146 = vpop.f32.mrb[0].mxu0
        %v1147 = vadd.f32 0.0, %v1146
        %1148 = vmatprep.mubr.f32.mxu0 0.0
        %1149 = vmatmul.mubr.f32.gmra.mrb[0].mxu0 %v699
        %v1150 = vpop.f32.mrb[0].mxu0
        %v1151 = vadd.f32 0.0, %v1150
        %v1152 = vpop.f32.mrb[0].mxu0
        %v1153 = vadd.f32 0.0, %v1152
        %1154 = vmatprep.mubr.f32.mxu0 0.0
        %1155 = vmatmul.mubr.f32.gmra.mrb[0].mxu0 %v702
        %v1156 = vpop.f32.mrb[0].mxu0
        %v1157 = vadd.f32 0.0, %v1156
        %v1158 = vpop.f32.mrb[0].mxu0
        %v1159 = vadd.f32 0.0, %v1158
        %1160 = vmatprep.mubr.f32.mxu0 0.0
        %1161 = vmatmul.mubr.f32.gmra.mrb[0].mxu0 %v705
        %v1162 = vpop.f32.mrb[0].mxu0
        %v1163 = vadd.f32 0.0, %v1162
        %v1164 = vpop.f32.mrb[0].mxu0
        %v1165 = vadd.f32 0.0, %v1164
        %1166 = vmatprep.mubr.f32.mxu0 0.0
        %1167 = vmatmul.mubr.f32.gmra.mrb[0].mxu0 %v708
        %v1168 = vpop.f32.mrb[0].mxu0
        %v1169 = vadd.f32 0.0, %v1168
        %v1170 = vpop.f32.mrb[0].mxu0
        %v1171 = vadd.f32 0.0, %v1170
        %1172 = vmatprep.mubr.f32.mxu0 0.0
        %1173 = vmatmul.mubr.f32.gmra.mrb[0].mxu0 %v711
        %v1174 = vpop.f32.mrb[0].mxu0
        %v1175 = vadd.f32 0.0, %v1174
        %v1176 = vpop.f32.mrb[0].mxu0
        %v1177 = vadd.f32 0.0, %v1176
        %1178 = vmatprep.mubr.f32.mxu0 0.0
        %1179 = vmatmul.mubr.f32.gmra.mrb[0].mxu0 %v714
        %v1180 = vpop.f32.mrb[0].mxu0
        %v1181 = vadd.f32 0.0, %v1180
        %v1182 = vpop.f32.mrb[0].mxu0
        %v1183 = vadd.f32 0.0, %v1182
        %1184 = vmatprep.mubr.f32.mxu0 0.0
        %1185 = vmatmul.mubr.f32.gmra.mrb[0].mxu0 %v717
        %v1186 = vpop.f32.mrb[0].mxu0
        %v1187 = vadd.f32 0.0, %v1186
        %v1188 = vpop.f32.mrb[0].mxu0
        %v1189 = vadd.f32 0.0, %v1188
        %1190 = vmatprep.mubr.f32.mxu0 0.0
        %1191 = vmatmul.mubr.f32.gmra.mrb[0].mxu0 %v720
        %v1192 = vpop.f32.mrb[0].mxu0
        %v1193 = vadd.f32 0.0, %v1192
        %v1194 = vpop.f32.mrb[0].mxu0
        %v1195 = vadd.f32 0.0, %v1194
        %1196 = vmatprep.mubr.f32.mxu0 0.0
        %1197 = vmatmul.mubr.f32.gmra.mrb[0].mxu0 %v723
        %v1198 = vpop.f32.mrb[0].mxu0
        %v1199 = vadd.f32 0.0, %v1198
        %v1200 = vpop.f32.mrb[0].mxu0
        %v1201 = vadd.f32 0.0, %v1200
        %1202 = vmatprep.mubr.f32.mxu0 0.0
        %1203 = vmatmul.mubr.f32.gmra.mrb[0].mxu0 %v726
        %v1204 = vpop.f32.mrb[0].mxu0
        %v1205 = vadd.f32 0.0, %v1204
        %v1206 = vpop.f32.mrb[0].mxu0
        %v1207 = vadd.f32 0.0, %v1206
        %1208 = vmatprep.mubr.f32.mxu0 0.0
        %1209 = vmatmul.mubr.f32.gmra.mrb[0].mxu0 %v729
        %v1210 = vpop.f32.mrb[0].mxu0
        %v1211 = vadd.f32 0.0, %v1210
        %v1212 = vpop.f32.mrb[0].mxu0
        %v1213 = vadd.f32 0.0, %v1212
        %1214 = vmatprep.mubr.f32.mxu0 0.0
        %1215 = vmatmul.mubr.f32.gmra.mrb[0].mxu0 %v732
        %v1216 = vpop.f32.mrb[0].mxu0
        %v1217 = vadd.f32 0.0, %v1216
        %v1218 = vpop.f32.mrb[0].mxu0
        %v1219 = vadd.f32 0.0, %v1218
        %1220 = vmatprep.mubr.f32.mxu0 0.0
        %1221 = vmatmul.mubr.f32.gmra.mrb[0].mxu0 %v735
        %v1222 = vpop.f32.mrb[0].mxu0
        %v1223 = vadd.f32 0.0, %v1222
        %v1224 = vpop.f32.mrb[0].mxu0
        %v1225 = vadd.f32 0.0, %v1224
        %1226 = vmatprep.mubr.f32.mxu0 0.0
        %1227 = vmatmul.mubr.f32.gmra.mrb[0].mxu0 %v738
        %v1228 = vpop.f32.mrb[0].mxu0
        %v1229 = vadd.f32 0.0, %v1228
        %v1230 = vpop.f32.mrb[0].mxu0
        %v1231 = vadd.f32 0.0, %v1230
        %1232 = vmatprep.mubr.f32.mxu0 0.0
        %1233 = vmatmul.mubr.f32.gmra.mrb[0].mxu0 %v741
        %v1234 = vpop.f32.mrb[0].mxu0
        %v1235 = vadd.f32 0.0, %v1234
        %v1236 = vpop.f32.mrb[0].mxu0
        %v1237 = vadd.f32 0.0, %v1236
        %1238 = vmatprep.mubr.f32.mxu0 0.0
        %1239 = vmatmul.mubr.f32.gmra.mrb[0].mxu0 %v744
        %v1240 = vpop.f32.mrb[0].mxu0
        %v1241 = vadd.f32 0.0, %v1240
        %v1242 = vpop.f32.mrb[0].mxu0
        %v1243 = vadd.f32 0.0, %v1242
        %1244 = vmatprep.mubr.f32.mxu0 0.0
        %1245 = vmatmul.mubr.f32.gmra.mrb[0].mxu0 %v747
        %v1246 = vpop.f32.mrb[0].mxu0
        %v1247 = vadd.f32 0.0, %v1246
        %v1248 = vpop.f32.mrb[0].mxu0
        %v1249 = vadd.f32 0.0, %v1248
        %1250 = vmatprep.mubr.f32.mxu0 0.0
        %1251 = vmatmul.mubr.f32.gmra.mrb[0].mxu0 %v750
        %v1252 = vpop.f32.mrb[0].mxu0
        %v1253 = vadd.f32 0.0, %v1252
        %v1254 = vpop.f32.mrb[0].mxu0
        %v1255 = vadd.f32 0.0, %v1254
        %1256 = vmatprep.mubr.f32.mxu0 0.0
        %1257 = vmatmul.mubr.f32.gmra.mrb[0].mxu0 %v753
        %v1258 = vpop.f32.mrb[0].mxu0
        %v1259 = vadd.f32 0.0, %v1258
        %v1260 = vpop.f32.mrb[0].mxu0
        %v1261 = vadd.f32 0.0, %v1260
        %1262 = vmatprep.mubr.f32.mxu0 0.0
        %1263 = vmatmul.mubr.f32.gmra.mrb[0].mxu0 %v756
        %v1264 = vpop.f32.mrb[0].mxu0
        %v1265 = vadd.f32 0.0, %v1264
        %v1266 = vpop.f32.mrb[0].mxu0
        %v1267 = vadd.f32 0.0, %v1266
        %1268 = vmatprep.mubr.f32.mxu0 0.0
        %1269 = vmatmul.mubr.f32.gmra.mrb[0].mxu0 %v759
        %v1270 = vpop.f32.mrb[0].mxu0
        %v1271 = vadd.f32 0.0, %v1270
        %v1272 = vpop.f32.mrb[0].mxu0
        %v1273 = vadd.f32 0.0, %v1272
        %1274 = vdwg.mxu0
        %v1275 = vadd.f32 %v500, %v828
        %v1276 = vadd.f32 %v501, %v830
        %v1277 = vadd.f32 %v502, %v1085
        %v1278 = vadd.f32 %v503, %v1087
        %v1279 = vadd.f32 %v504, %v834
        %v1280 = vadd.f32 %v505, %v836
        %v1281 = vadd.f32 %v506, %v1091
        %v1282 = vadd.f32 %v507, %v1093
        %v1283 = vadd.f32 %v508, %v840
        %v1284 = vadd.f32 %v509, %v842
        %v1285 = vadd.f32 %v510, %v1097
        %v1286 = vadd.f32 %v511, %v1099
        %v1287 = vadd.f32 %v512, %v846
        %v1288 = vadd.f32 %v513, %v848
        %v1289 = vadd.f32 %v514, %v1103
        %v1290 = vadd.f32 %v515, %v1105
        %v1291 = vadd.f32 %v516, %v852
        %v1292 = vadd.f32 %v517, %v854
        %v1293 = vadd.f32 %v518, %v1109
        %v1294 = vadd.f32 %v519, %v1111
        %v1295 = vadd.f32 %v520, %v858
        %v1296 = vadd.f32 %v521, %v860
        %v1297 = vadd.f32 %v522, %v1115
        %v1298 = vadd.f32 %v523, %v1117
        %v1299 = vadd.f32 %v524, %v864
        %v1300 = vadd.f32 %v525, %v866
        %v1301 = vadd.f32 %v526, %v1121
        %v1302 = vadd.f32 %v527, %v1123
        %v1303 = vadd.f32 %v528, %v870
        %v1304 = vadd.f32 %v529, %v872
        %v1305 = vadd.f32 %v530, %v1127
        %v1306 = vadd.f32 %v531, %v1129
        %v1307 = vadd.f32 %v532, %v876
        %v1308 = vadd.f32 %v533, %v878
        %v1309 = vadd.f32 %v534, %v1133
        %v1310 = vadd.f32 %v535, %v1135
        %v1311 = vadd.f32 %v536, %v882
        %v1312 = vadd.f32 %v537, %v884
        %v1313 = vadd.f32 %v538, %v1139
        %v1314 = vadd.f32 %v539, %v1141
        %v1315 = vadd.f32 %v540, %v888
        %v1316 = vadd.f32 %v541, %v890
        %v1317 = vadd.f32 %v542, %v1145
        %v1318 = vadd.f32 %v543, %v1147
        %v1319 = vadd.f32 %v544, %v894
        %v1320 = vadd.f32 %v545, %v896
        %v1321 = vadd.f32 %v546, %v1151
        %v1322 = vadd.f32 %v547, %v1153
        %v1323 = vadd.f32 %v548, %v900
        %v1324 = vadd.f32 %v549, %v902
        %v1325 = vadd.f32 %v550, %v1157
        %v1326 = vadd.f32 %v551, %v1159
        %v1327 = vadd.f32 %v552, %v906
        %v1328 = vadd.f32 %v553, %v908
        %v1329 = vadd.f32 %v554, %v1163
        %v1330 = vadd.f32 %v555, %v1165
        %v1331 = vadd.f32 %v556, %v912
        %v1332 = vadd.f32 %v557, %v914
        %v1333 = vadd.f32 %v558, %v1169
        %v1334 = vadd.f32 %v559, %v1171
        %v1335 = vadd.f32 %v560, %v918
        %v1336 = vadd.f32 %v561, %v920
        %v1337 = vadd.f32 %v562, %v1175
        %v1338 = vadd.f32 %v563, %v1177
        %v1339 = vadd.f32 %v564, %v924
        %v1340 = vadd.f32 %v565, %v926
        %v1341 = vadd.f32 %v566, %v1181
        %v1342 = vadd.f32 %v567, %v1183
        %v1343 = vadd.f32 %v568, %v930
        %v1344 = vadd.f32 %v569, %v932
        %v1345 = vadd.f32 %v570, %v1187
        %v1346 = vadd.f32 %v571, %v1189
        %v1347 = vadd.f32 %v572, %v936
        %v1348 = vadd.f32 %v573, %v938
        %v1349 = vadd.f32 %v574, %v1193
        %v1350 = vadd.f32 %v575, %v1195
        %v1351 = vadd.f32 %v576, %v942
        %v1352 = vadd.f32 %v577, %v944
        %v1353 = vadd.f32 %v578, %v1199
        %v1354 = vadd.f32 %v579, %v1201
        %v1355 = vadd.f32 %v580, %v948
        %v1356 = vadd.f32 %v581, %v950
        %v1357 = vadd.f32 %v582, %v1205
        %v1358 = vadd.f32 %v583, %v1207
        %v1359 = vadd.f32 %v584, %v954
        %v1360 = vadd.f32 %v585, %v956
        %v1361 = vadd.f32 %v586, %v1211
        %v1362 = vadd.f32 %v587, %v1213
        %v1363 = vadd.f32 %v588, %v960
        %v1364 = vadd.f32 %v589, %v962
        %v1365 = vadd.f32 %v590, %v1217
        %v1366 = vadd.f32 %v591, %v1219
        %v1367 = vadd.f32 %v592, %v966
        %v1368 = vadd.f32 %v593, %v968
        %v1369 = vadd.f32 %v594, %v1223
        %v1370 = vadd.f32 %v595, %v1225
        %v1371 = vadd.f32 %v596, %v972
        %v1372 = vadd.f32 %v597, %v974
        %v1373 = vadd.f32 %v598, %v1229
        %v1374 = vadd.f32 %v599, %v1231
        %v1375 = vadd.f32 %v600, %v978
        %v1376 = vadd.f32 %v601, %v980
        %v1377 = vadd.f32 %v602, %v1235
        %v1378 = vadd.f32 %v603, %v1237
        %v1379 = vadd.f32 %v604, %v984
        %v1380 = vadd.f32 %v605, %v986
        %v1381 = vadd.f32 %v606, %v1241
        %v1382 = vadd.f32 %v607, %v1243
        %v1383 = vadd.f32 %v608, %v990
        %v1384 = vadd.f32 %v609, %v992
        %v1385 = vadd.f32 %v610, %v1247
        %v1386 = vadd.f32 %v611, %v1249
        %v1387 = vadd.f32 %v612, %v996
        %v1388 = vadd.f32 %v613, %v998
        %v1389 = vadd.f32 %v614, %v1253
        %v1390 = vadd.f32 %v615, %v1255
        %v1391 = vadd.f32 %v616, %v1002
        %v1392 = vadd.f32 %v617, %v1004
        %v1393 = vadd.f32 %v618, %v1259
        %v1394 = vadd.f32 %v619, %v1261
        %v1395 = vadd.f32 %v620, %v1008
        %v1396 = vadd.f32 %v621, %v1010
        %v1397 = vadd.f32 %v622, %v1265
        %v1398 = vadd.f32 %v623, %v1267
        %v1399 = vadd.f32 %v624, %v1014
        %v1400 = vadd.f32 %v625, %v1016
        %v1401 = vadd.f32 %v626, %v1271
        %v1402 = vadd.f32 %v627, %v1273
        %v1403 = vand.u32 2147483647, %v1275
        %v1404 = vand.u32 2147483647, %v1276
        %v1405 = vand.u32 2147483647, %v1277
        %v1406 = vand.u32 2147483647, %v1278
        %v1407 = vand.u32 2147483647, %v1279
        %v1408 = vand.u32 2147483647, %v1280
        %v1409 = vand.u32 2147483647, %v1281
        %v1410 = vand.u32 2147483647, %v1282
        %v1411 = vand.u32 2147483647, %v1283
        %v1412 = vand.u32 2147483647, %v1284
        %v1413 = vand.u32 2147483647, %v1285
        %v1414 = vand.u32 2147483647, %v1286
        %v1415 = vand.u32 2147483647, %v1287
        %v1416 = vand.u32 2147483647, %v1288
        %v1417 = vand.u32 2147483647, %v1289
        %v1418 = vand.u32 2147483647, %v1290
        %v1419 = vand.u32 2147483647, %v1291
        %v1420 = vand.u32 2147483647, %v1292
        %v1421 = vand.u32 2147483647, %v1293
        %v1422 = vand.u32 2147483647, %v1294
        %v1423 = vand.u32 2147483647, %v1295
        %v1424 = vand.u32 2147483647, %v1296
        %v1425 = vand.u32 2147483647, %v1297
        %v1426 = vand.u32 2147483647, %v1298
        %v1427 = vand.u32 2147483647, %v1299
        %v1428 = vand.u32 2147483647, %v1300
        %v1429 = vand.u32 2147483647, %v1301
        %v1430 = vand.u32 2147483647, %v1302
        %v1431 = vand.u32 2147483647, %v1303
        %v1432 = vand.u32 2147483647, %v1304
        %v1433 = vand.u32 2147483647, %v1305
        %v1434 = vand.u32 2147483647, %v1306
        %v1435 = vand.u32 2147483647, %v1307
        %v1436 = vand.u32 2147483647, %v1308
        %v1437 = vand.u32 2147483647, %v1309
        %v1438 = vand.u32 2147483647, %v1310
        %v1439 = vand.u32 2147483647, %v1311
        %v1440 = vand.u32 2147483647, %v1312
        %v1441 = vand.u32 2147483647, %v1313
        %v1442 = vand.u32 2147483647, %v1314
        %v1443 = vand.u32 2147483647, %v1315
        %v1444 = vand.u32 2147483647, %v1316
        %v1445 = vand.u32 2147483647, %v1317
        %v1446 = vand.u32 2147483647, %v1318
        %v1447 = vand.u32 2147483647, %v1319
        %v1448 = vand.u32 2147483647, %v1320
        %v1449 = vand.u32 2147483647, %v1321
        %v1450 = vand.u32 2147483647, %v1322
        %v1451 = vand.u32 2147483647, %v1323
        %v1452 = vand.u32 2147483647, %v1324
        %v1453 = vand.u32 2147483647, %v1325
        %v1454 = vand.u32 2147483647, %v1326
        %v1455 = vand.u32 2147483647, %v1327
        %v1456 = vand.u32 2147483647, %v1328
        %v1457 = vand.u32 2147483647, %v1329
        %v1458 = vand.u32 2147483647, %v1330
        %v1459 = vand.u32 2147483647, %v1331
        %v1460 = vand.u32 2147483647, %v1332
        %v1461 = vand.u32 2147483647, %v1333
        %v1462 = vand.u32 2147483647, %v1334
        %v1463 = vand.u32 2147483647, %v1335
        %v1464 = vand.u32 2147483647, %v1336
        %v1465 = vand.u32 2147483647, %v1337
        %v1466 = vand.u32 2147483647, %v1338
        %v1467 = vand.u32 2147483647, %v1339
        %v1468 = vand.u32 2147483647, %v1340
        %v1469 = vand.u32 2147483647, %v1341
        %v1470 = vand.u32 2147483647, %v1342
        %v1471 = vand.u32 2147483647, %v1343
        %v1472 = vand.u32 2147483647, %v1344
        %v1473 = vand.u32 2147483647, %v1345
        %v1474 = vand.u32 2147483647, %v1346
        %v1475 = vand.u32 2147483647, %v1347
        %v1476 = vand.u32 2147483647, %v1348
        %v1477 = vand.u32 2147483647, %v1349
        %v1478 = vand.u32 2147483647, %v1350
        %v1479 = vand.u32 2147483647, %v1351
        %v1480 = vand.u32 2147483647, %v1352
        %v1481 = vand.u32 2147483647, %v1353
        %v1482 = vand.u32 2147483647, %v1354
        %v1483 = vand.u32 2147483647, %v1355
        %v1484 = vand.u32 2147483647, %v1356
        %v1485 = vand.u32 2147483647, %v1357
        %v1486 = vand.u32 2147483647, %v1358
        %v1487 = vand.u32 2147483647, %v1359
        %v1488 = vand.u32 2147483647, %v1360
        %v1489 = vand.u32 2147483647, %v1361
        %v1490 = vand.u32 2147483647, %v1362
        %v1491 = vand.u32 2147483647, %v1363
        %v1492 = vand.u32 2147483647, %v1364
        %v1493 = vand.u32 2147483647, %v1365
        %v1494 = vand.u32 2147483647, %v1366
        %v1495 = vand.u32 2147483647, %v1367
        %v1496 = vand.u32 2147483647, %v1368
        %v1497 = vand.u32 2147483647, %v1369
        %v1498 = vand.u32 2147483647, %v1370
        %v1499 = vand.u32 2147483647, %v1371
        %v1500 = vand.u32 2147483647, %v1372
        %v1501 = vand.u32 2147483647, %v1373
        %v1502 = vand.u32 2147483647, %v1374
        %v1503 = vand.u32 2147483647, %v1375
        %v1504 = vand.u32 2147483647, %v1376
        %v1505 = vand.u32 2147483647, %v1377
        %v1506 = vand.u32 2147483647, %v1378
        %v1507 = vand.u32 2147483647, %v1379
        %v1508 = vand.u32 2147483647, %v1380
        %v1509 = vand.u32 2147483647, %v1381
        %v1510 = vand.u32 2147483647, %v1382
        %v1511 = vand.u32 2147483647, %v1383
        %v1512 = vand.u32 2147483647, %v1384
        %v1513 = vand.u32 2147483647, %v1385
        %v1514 = vand.u32 2147483647, %v1386
        %v1515 = vand.u32 2147483647, %v1387
        %v1516 = vand.u32 2147483647, %v1388
        %v1517 = vand.u32 2147483647, %v1389
        %v1518 = vand.u32 2147483647, %v1390
        %v1519 = vand.u32 2147483647, %v1391
        %v1520 = vand.u32 2147483647, %v1392
        %v1521 = vand.u32 2147483647, %v1393
        %v1522 = vand.u32 2147483647, %v1394
        %v1523 = vand.u32 2147483647, %v1395
        %v1524 = vand.u32 2147483647, %v1396
        %v1525 = vand.u32 2147483647, %v1397
        %v1526 = vand.u32 2147483647, %v1398
        %v1527 = vand.u32 2147483647, %v1399
        %v1528 = vand.u32 2147483647, %v1400
        %v1529 = vand.u32 2147483647, %v1401
        %v1530 = vand.u32 2147483647, %v1402
        %v1531 = vld [vmem:[%s488] sm:$0xff]
        %v1532 = vld [vmem:[%s488 + $0x8] sm:$0xff]
        %v1533 = vld [vmem:[%s488 + $0x10] sm:$0xff]
        %v1534 = vld [vmem:[%s488 + $0x18] sm:$0xff]
        %v1535 = vld [vmem:[%s488 + $0x20] sm:$0xff]
        %v1536 = vld [vmem:[%s488 + $0x28] sm:$0xff]
        %v1537 = vld [vmem:[%s488 + $0x30] sm:$0xff]
        %v1538 = vld [vmem:[%s488 + $0x38] sm:$0xff]
        %v1539 = vld [vmem:[%s488 + $0x40] sm:$0xff]
        %v1540 = vld [vmem:[%s488 + $0x48] sm:$0xff]
        %v1541 = vld [vmem:[%s488 + $0x50] sm:$0xff]
        %v1542 = vld [vmem:[%s488 + $0x58] sm:$0xff]
        %v1543 = vld [vmem:[%s488 + $0x60] sm:$0xff]
        %v1544 = vld [vmem:[%s488 + $0x68] sm:$0xff]
        %v1545 = vld [vmem:[%s488 + $0x70] sm:$0xff]
        %v1546 = vld [vmem:[%s488 + $0x78] sm:$0xff]
        %v1547 = vld [vmem:[%s488 + $0x80] sm:$0xff]
        %v1548 = vld [vmem:[%s488 + $0x88] sm:$0xff]
        %v1549 = vld [vmem:[%s488 + $0x90] sm:$0xff]
        %v1550 = vld [vmem:[%s488 + $0x98] sm:$0xff]
        %v1551 = vld [vmem:[%s488 + $0xa0] sm:$0xff]
        %v1552 = vld [vmem:[%s488 + $0xa8] sm:$0xff]
        %v1553 = vld [vmem:[%s488 + $0xb0] sm:$0xff]
        %v1554 = vld [vmem:[%s488 + $0xb8] sm:$0xff]
        %v1555 = vld [vmem:[%s488 + $0xc0] sm:$0xff]
        %v1556 = vld [vmem:[%s488 + $0xc8] sm:$0xff]
        %v1557 = vld [vmem:[%s488 + $0xd0] sm:$0xff]
        %v1558 = vld [vmem:[%s488 + $0xd8] sm:$0xff]
        %v1559 = vld [vmem:[%s488 + $0xe0] sm:$0xff]
        %v1560 = vld [vmem:[%s488 + $0xe8] sm:$0xff]
        %v1561 = vld [vmem:[%s488 + $0xf0] sm:$0xff]
        %v1562 = vld [vmem:[%s488 + $0xf8] sm:$0xff]
        %v1563 = vld [vmem:[%s405] sm:$0xff]
        %v1564 = vld [vmem:[%s405 + $0x8] sm:$0xff]
        %v1565 = vld [vmem:[%s405 + $0x10] sm:$0xff]
        %v1566 = vld [vmem:[%s405 + $0x18] sm:$0xff]
        %v1568 = vsel %vm664, %v1531, 0
        %v1571 = vsel %vm664, %v1532, 0
        %v1574 = vsel %vm664, %v1533, 0
        %v1577 = vsel %vm664, %v1534, 0
        %v1580 = vsel %vm664, %v1535, 0
        %v1583 = vsel %vm664, %v1536, 0
        %v1586 = vsel %vm664, %v1537, 0
        %v1589 = vsel %vm664, %v1538, 0
        %v1592 = vsel %vm664, %v1539, 0
        %v1595 = vsel %vm664, %v1540, 0
        %v1598 = vsel %vm664, %v1541, 0
        %v1601 = vsel %vm664, %v1542, 0
        %v1604 = vsel %vm664, %v1543, 0
        %v1607 = vsel %vm664, %v1544, 0
        %v1610 = vsel %vm664, %v1545, 0
        %v1613 = vsel %vm664, %v1546, 0
        %v1616 = vsel %vm664, %v1547, 0
        %v1619 = vsel %vm664, %v1548, 0
        %v1622 = vsel %vm664, %v1549, 0
        %v1625 = vsel %vm664, %v1550, 0
        %v1628 = vsel %vm664, %v1551, 0
        %v1631 = vsel %vm664, %v1552, 0
        %v1634 = vsel %vm664, %v1553, 0
        %v1637 = vsel %vm664, %v1554, 0
        %v1640 = vsel %vm664, %v1555, 0
        %v1643 = vsel %vm664, %v1556, 0
        %v1646 = vsel %vm664, %v1557, 0
        %v1649 = vsel %vm664, %v1558, 0
        %v1652 = vsel %vm664, %v1559, 0
        %v1655 = vsel %vm664, %v1560, 0
        %v1658 = vsel %vm664, %v1561, 0
        %v1661 = vsel %vm664, %v1562, 0
        %1663 = vmatprep.subr.mxu0 %v1564
        %1664 = vmatpush1.msra.mxu0 %v1563
        %1665 = vmatprep.subr.mxu0 0.0
        %1666 = vmatpush1.msra.mxu0 0.0
        %1667 = vmatprep.subr.mxu0 0.0
        %1668 = vmatpush1.msra.mxu0 0.0
        %1669 = vmatprep.subr.mxu0 0.0
        %1670 = vmatpush1.msra.mxu0 0.0
        %1671 = vmatprep.subr.mxu0 0.0
        %1672 = vmatpush1.msra.mxu0 0.0
        %1673 = vmatprep.subr.mxu0 0.0
        %1674 = vmatpush1.msra.mxu0 0.0
        %1675 = vmatprep.subr.mxu0 0.0
        %1676 = vmatpush1.msra.mxu0 0.0
        %1677 = vmatprep.subr.mxu0 0.0
        %1678 = vmatpush1.msra.mxu0 0.0
        %1679 = vmatprep.subr.mxu0 0.0
        %1680 = vmatpush1.msra.mxu0 0.0
        %1681 = vmatprep.subr.mxu0 0.0
        %1682 = vmatpush1.msra.mxu0 0.0
        %1683 = vmatprep.subr.mxu0 0.0
        %1684 = vmatpush1.msra.mxu0 0.0
        %1685 = vmatprep.subr.mxu0 0.0
        %1686 = vmatpush1.msra.mxu0 0.0
        %1687 = vmatprep.subr.mxu0 0.0
        %1688 = vmatpush1.msra.mxu0 0.0
        %1689 = vmatprep.subr.mxu0 0.0
        %1690 = vmatpush1.msra.mxu0 0.0
        %1691 = vmatprep.subr.mxu0 0.0
        %1692 = vmatpush1.msra.mxu0 0.0
        %1693 = vmatprep.subr.mxu0 0.0
        %1694 = vmatpush1.msra.mxu0 0.0
        %1695 = vmatprep.subr.mxu0 0.0
        %1696 = vmatpush1.msra.mxu0 0.0
        %1697 = vmatprep.subr.mxu0 0.0
        %1698 = vmatpush1.msra.mxu0 0.0
        %1699 = vmatprep.subr.mxu0 0.0
        %1700 = vmatpush1.msra.mxu0 0.0
        %1701 = vmatprep.subr.mxu0 0.0
        %1702 = vmatpush1.msra.mxu0 0.0
        %1703 = vmatprep.subr.mxu0 0.0
        %1704 = vmatpush1.msra.mxu0 0.0
        %1705 = vmatprep.subr.mxu0 0.0
        %1706 = vmatpush1.msra.mxu0 0.0
        %1707 = vmatprep.subr.mxu0 0.0
        %1708 = vmatpush1.msra.mxu0 0.0
        %1709 = vmatprep.subr.mxu0 0.0
        %1710 = vmatpush1.msra.mxu0 0.0
        %1711 = vmatprep.subr.mxu0 0.0
        %1712 = vmatpush1.msra.mxu0 0.0
        %1713 = vmatprep.subr.mxu0 0.0
        %1714 = vmatpush1.msra.mxu0 0.0
        %1715 = vmatprep.subr.mxu0 0.0
        %1716 = vmatpush1.msra.mxu0 0.0
        %1717 = vmatprep.subr.mxu0 0.0
        %1718 = vmatpush1.msra.mxu0 0.0
        %1719 = vmatprep.subr.mxu0 0.0
        %1720 = vmatpush1.msra.mxu0 0.0
        %1721 = vmatprep.subr.mxu0 0.0
        %1722 = vmatpush1.msra.mxu0 0.0
        %1723 = vmatprep.subr.mxu0 0.0
        %1724 = vmatpush1.msra.mxu0 0.0
        %1725 = vmatprep.subr.mxu0 0.0
        %1726 = vmatpush1.msra.mxu0 0.0
        %1727 = vmatprep.mubr.f32.mxu0 0.0
        %1728 = vmatmul.mubr.f32.gmra.mrb[0].mxu0 %v1568
        %v1729 = vpop.f32.mrb[0].mxu0
        %v1730 = vadd.f32 0.0, %v1729
        %v1731 = vpop.f32.mrb[0].mxu0
        %v1732 = vadd.f32 0.0, %v1731
        %1733 = vmatprep.mubr.f32.mxu0 0.0
        %1734 = vmatmul.mubr.f32.gmra.mrb[0].mxu0 %v1571
        %v1735 = vpop.f32.mrb[0].mxu0
        %v1736 = vadd.f32 0.0, %v1735
        %v1737 = vpop.f32.mrb[0].mxu0
        %v1738 = vadd.f32 0.0, %v1737
        %1739 = vmatprep.mubr.f32.mxu0 0.0
        %1740 = vmatmul.mubr.f32.gmra.mrb[0].mxu0 %v1574
        %v1741 = vpop.f32.mrb[0].mxu0
        %v1742 = vadd.f32 0.0, %v1741
        %v1743 = vpop.f32.mrb[0].mxu0
        %v1744 = vadd.f32 0.0, %v1743
        %1745 = vmatprep.mubr.f32.mxu0 0.0
        %1746 = vmatmul.mubr.f32.gmra.mrb[0].mxu0 %v1577
        %v1747 = vpop.f32.mrb[0].mxu0
        %v1748 = vadd.f32 0.0, %v1747
        %v1749 = vpop.f32.mrb[0].mxu0
        %v1750 = vadd.f32 0.0, %v1749
        %1751 = vmatprep.mubr.f32.mxu0 0.0
        %1752 = vmatmul.mubr.f32.gmra.mrb[0].mxu0 %v1580
        %v1753 = vpop.f32.mrb[0].mxu0
        %v1754 = vadd.f32 0.0, %v1753
        %v1755 = vpop.f32.mrb[0].mxu0
        %v1756 = vadd.f32 0.0, %v1755
        %1757 = vmatprep.mubr.f32.mxu0 0.0
        %1758 = vmatmul.mubr.f32.gmra.mrb[0].mxu0 %v1583
        %v1759 = vpop.f32.mrb[0].mxu0
        %v1760 = vadd.f32 0.0, %v1759
        %v1761 = vpop.f32.mrb[0].mxu0
        %v1762 = vadd.f32 0.0, %v1761
        %1763 = vmatprep.mubr.f32.mxu0 0.0
        %1764 = vmatmul.mubr.f32.gmra.mrb[0].mxu0 %v1586
        %v1765 = vpop.f32.mrb[0].mxu0
        %v1766 = vadd.f32 0.0, %v1765
        %v1767 = vpop.f32.mrb[0].mxu0
        %v1768 = vadd.f32 0.0, %v1767
        %1769 = vmatprep.mubr.f32.mxu0 0.0
        %1770 = vmatmul.mubr.f32.gmra.mrb[0].mxu0 %v1589
        %v1771 = vpop.f32.mrb[0].mxu0
        %v1772 = vadd.f32 0.0, %v1771
        %v1773 = vpop.f32.mrb[0].mxu0
        %v1774 = vadd.f32 0.0, %v1773
        %1775 = vmatprep.mubr.f32.mxu0 0.0
        %1776 = vmatmul.mubr.f32.gmra.mrb[0].mxu0 %v1592
        %v1777 = vpop.f32.mrb[0].mxu0
        %v1778 = vadd.f32 0.0, %v1777
        %v1779 = vpop.f32.mrb[0].mxu0
        %v1780 = vadd.f32 0.0, %v1779
        %1781 = vmatprep.mubr.f32.mxu0 0.0
        %1782 = vmatmul.mubr.f32.gmra.mrb[0].mxu0 %v1595
        %v1783 = vpop.f32.mrb[0].mxu0
        %v1784 = vadd.f32 0.0, %v1783
        %v1785 = vpop.f32.mrb[0].mxu0
        %v1786 = vadd.f32 0.0, %v1785
        %1787 = vmatprep.mubr.f32.mxu0 0.0
        %1788 = vmatmul.mubr.f32.gmra.mrb[0].mxu0 %v1598
        %v1789 = vpop.f32.mrb[0].mxu0
        %v1790 = vadd.f32 0.0, %v1789
        %v1791 = vpop.f32.mrb[0].mxu0
        %v1792 = vadd.f32 0.0, %v1791
        %1793 = vmatprep.mubr.f32.mxu0 0.0
        %1794 = vmatmul.mubr.f32.gmra.mrb[0].mxu0 %v1601
        %v1795 = vpop.f32.mrb[0].mxu0
        %v1796 = vadd.f32 0.0, %v1795
        %v1797 = vpop.f32.mrb[0].mxu0
        %v1798 = vadd.f32 0.0, %v1797
        %1799 = vmatprep.mubr.f32.mxu0 0.0
        %1800 = vmatmul.mubr.f32.gmra.mrb[0].mxu0 %v1604
        %v1801 = vpop.f32.mrb[0].mxu0
        %v1802 = vadd.f32 0.0, %v1801
        %v1803 = vpop.f32.mrb[0].mxu0
        %v1804 = vadd.f32 0.0, %v1803
        %1805 = vmatprep.mubr.f32.mxu0 0.0
        %1806 = vmatmul.mubr.f32.gmra.mrb[0].mxu0 %v1607
        %v1807 = vpop.f32.mrb[0].mxu0
        %v1808 = vadd.f32 0.0, %v1807
        %v1809 = vpop.f32.mrb[0].mxu0
        %v1810 = vadd.f32 0.0, %v1809
        %1811 = vmatprep.mubr.f32.mxu0 0.0
        %1812 = vmatmul.mubr.f32.gmra.mrb[0].mxu0 %v1610
        %v1813 = vpop.f32.mrb[0].mxu0
        %v1814 = vadd.f32 0.0, %v1813
        %v1815 = vpop.f32.mrb[0].mxu0
        %v1816 = vadd.f32 0.0, %v1815
        %1817 = vmatprep.mubr.f32.mxu0 0.0
        %1818 = vmatmul.mubr.f32.gmra.mrb[0].mxu0 %v1613
        %v1819 = vpop.f32.mrb[0].mxu0
        %v1820 = vadd.f32 0.0, %v1819
        %v1821 = vpop.f32.mrb[0].mxu0
        %v1822 = vadd.f32 0.0, %v1821
        %1823 = vmatprep.mubr.f32.mxu0 0.0
        %1824 = vmatmul.mubr.f32.gmra.mrb[0].mxu0 %v1616
        %v1825 = vpop.f32.mrb[0].mxu0
        %v1826 = vadd.f32 0.0, %v1825
        %v1827 = vpop.f32.mrb[0].mxu0
        %v1828 = vadd.f32 0.0, %v1827
        %1829 = vmatprep.mubr.f32.mxu0 0.0
        %1830 = vmatmul.mubr.f32.gmra.mrb[0].mxu0 %v1619
        %v1831 = vpop.f32.mrb[0].mxu0
        %v1832 = vadd.f32 0.0, %v1831
        %v1833 = vpop.f32.mrb[0].mxu0
        %v1834 = vadd.f32 0.0, %v1833
        %1835 = vmatprep.mubr.f32.mxu0 0.0
        %1836 = vmatmul.mubr.f32.gmra.mrb[0].mxu0 %v1622
        %v1837 = vpop.f32.mrb[0].mxu0
        %v1838 = vadd.f32 0.0, %v1837
        %v1839 = vpop.f32.mrb[0].mxu0
        %v1840 = vadd.f32 0.0, %v1839
        %1841 = vmatprep.mubr.f32.mxu0 0.0
        %1842 = vmatmul.mubr.f32.gmra.mrb[0].mxu0 %v1625
        %v1843 = vpop.f32.mrb[0].mxu0
        %v1844 = vadd.f32 0.0, %v1843
        %v1845 = vpop.f32.mrb[0].mxu0
        %v1846 = vadd.f32 0.0, %v1845
        %1847 = vmatprep.mubr.f32.mxu0 0.0
        %1848 = vmatmul.mubr.f32.gmra.mrb[0].mxu0 %v1628
        %v1849 = vpop.f32.mrb[0].mxu0
        %v1850 = vadd.f32 0.0, %v1849
        %v1851 = vpop.f32.mrb[0].mxu0
        %v1852 = vadd.f32 0.0, %v1851
        %1853 = vmatprep.mubr.f32.mxu0 0.0
        %1854 = vmatmul.mubr.f32.gmra.mrb[0].mxu0 %v1631
        %v1855 = vpop.f32.mrb[0].mxu0
        %v1856 = vadd.f32 0.0, %v1855
        %v1857 = vpop.f32.mrb[0].mxu0
        %v1858 = vadd.f32 0.0, %v1857
        %1859 = vmatprep.mubr.f32.mxu0 0.0
        %1860 = vmatmul.mubr.f32.gmra.mrb[0].mxu0 %v1634
        %v1861 = vpop.f32.mrb[0].mxu0
        %v1862 = vadd.f32 0.0, %v1861
        %v1863 = vpop.f32.mrb[0].mxu0
        %v1864 = vadd.f32 0.0, %v1863
        %1865 = vmatprep.mubr.f32.mxu0 0.0
        %1866 = vmatmul.mubr.f32.gmra.mrb[0].mxu0 %v1637
        %v1867 = vpop.f32.mrb[0].mxu0
        %v1868 = vadd.f32 0.0, %v1867
        %v1869 = vpop.f32.mrb[0].mxu0
        %v1870 = vadd.f32 0.0, %v1869
        %1871 = vmatprep.mubr.f32.mxu0 0.0
        %1872 = vmatmul.mubr.f32.gmra.mrb[0].mxu0 %v1640
        %v1873 = vpop.f32.mrb[0].mxu0
        %v1874 = vadd.f32 0.0, %v1873
        %v1875 = vpop.f32.mrb[0].mxu0
        %v1876 = vadd.f32 0.0, %v1875
        %1877 = vmatprep.mubr.f32.mxu0 0.0
        %1878 = vmatmul.mubr.f32.gmra.mrb[0].mxu0 %v1643
        %v1879 = vpop.f32.mrb[0].mxu0
        %v1880 = vadd.f32 0.0, %v1879
        %v1881 = vpop.f32.mrb[0].mxu0
        %v1882 = vadd.f32 0.0, %v1881
        %1883 = vmatprep.mubr.f32.mxu0 0.0
        %1884 = vmatmul.mubr.f32.gmra.mrb[0].mxu0 %v1646
        %v1885 = vpop.f32.mrb[0].mxu0
        %v1886 = vadd.f32 0.0, %v1885
        %v1887 = vpop.f32.mrb[0].mxu0
        %v1888 = vadd.f32 0.0, %v1887
        %1889 = vmatprep.mubr.f32.mxu0 0.0
        %1890 = vmatmul.mubr.f32.gmra.mrb[0].mxu0 %v1649
        %v1891 = vpop.f32.mrb[0].mxu0
        %v1892 = vadd.f32 0.0, %v1891
        %v1893 = vpop.f32.mrb[0].mxu0
        %v1894 = vadd.f32 0.0, %v1893
        %1895 = vmatprep.mubr.f32.mxu0 0.0
        %1896 = vmatmul.mubr.f32.gmra.mrb[0].mxu0 %v1652
        %v1897 = vpop.f32.mrb[0].mxu0
        %v1898 = vadd.f32 0.0, %v1897
        %v1899 = vpop.f32.mrb[0].mxu0
        %v1900 = vadd.f32 0.0, %v1899
        %1901 = vmatprep.mubr.f32.mxu0 0.0
        %1902 = vmatmul.mubr.f32.gmra.mrb[0].mxu0 %v1655
        %v1903 = vpop.f32.mrb[0].mxu0
        %v1904 = vadd.f32 0.0, %v1903
        %v1905 = vpop.f32.mrb[0].mxu0
        %v1906 = vadd.f32 0.0, %v1905
        %1907 = vmatprep.mubr.f32.mxu0 0.0
        %1908 = vmatmul.mubr.f32.gmra.mrb[0].mxu0 %v1658
        %v1909 = vpop.f32.mrb[0].mxu0
        %v1910 = vadd.f32 0.0, %v1909
        %v1911 = vpop.f32.mrb[0].mxu0
        %v1912 = vadd.f32 0.0, %v1911
        %1913 = vmatprep.mubr.f32.mxu0 0.0
        %1914 = vmatmul.mubr.f32.gmra.mrb[0].mxu0 %v1661
        %v1915 = vpop.f32.mrb[0].mxu0
        %v1916 = vadd.f32 0.0, %v1915
        %v1917 = vpop.f32.mrb[0].mxu0
        %v1918 = vadd.f32 0.0, %v1917
        %1919 = vdwg.mxu0
        %1920 = vmatprep.subr.mxu0 %v1566
        %1921 = vmatpush1.msra.mxu0 %v1565
        %1922 = vmatprep.subr.mxu0 0.0
        %1923 = vmatpush1.msra.mxu0 0.0
        %1924 = vmatprep.subr.mxu0 0.0
        %1925 = vmatpush1.msra.mxu0 0.0
        %1926 = vmatprep.subr.mxu0 0.0
        %1927 = vmatpush1.msra.mxu0 0.0
        %1928 = vmatprep.subr.mxu0 0.0
        %1929 = vmatpush1.msra.mxu0 0.0
        %1930 = vmatprep.subr.mxu0 0.0
        %1931 = vmatpush1.msra.mxu0 0.0
        %1932 = vmatprep.subr.mxu0 0.0
        %1933 = vmatpush1.msra.mxu0 0.0
        %1934 = vmatprep.subr.mxu0 0.0
        %1935 = vmatpush1.msra.mxu0 0.0
        %1936 = vmatprep.subr.mxu0 0.0
        %1937 = vmatpush1.msra.mxu0 0.0
        %1938 = vmatprep.subr.mxu0 0.0
        %1939 = vmatpush1.msra.mxu0 0.0
        %1940 = vmatprep.subr.mxu0 0.0
        %1941 = vmatpush1.msra.mxu0 0.0
        %1942 = vmatprep.subr.mxu0 0.0
        %1943 = vmatpush1.msra.mxu0 0.0
        %1944 = vmatprep.subr.mxu0 0.0
        %1945 = vmatpush1.msra.mxu0 0.0
        %1946 = vmatprep.subr.mxu0 0.0
        %1947 = vmatpush1.msra.mxu0 0.0
        %1948 = vmatprep.subr.mxu0 0.0
        %1949 = vmatpush1.msra.mxu0 0.0
        %1950 = vmatprep.subr.mxu0 0.0
        %1951 = vmatpush1.msra.mxu0 0.0
        %1952 = vmatprep.subr.mxu0 0.0
        %1953 = vmatpush1.msra.mxu0 0.0
        %1954 = vmatprep.subr.mxu0 0.0
        %1955 = vmatpush1.msra.mxu0 0.0
        %1956 = vmatprep.subr.mxu0 0.0
        %1957 = vmatpush1.msra.mxu0 0.0
        %1958 = vmatprep.subr.mxu0 0.0
        %1959 = vmatpush1.msra.mxu0 0.0
        %1960 = vmatprep.subr.mxu0 0.0
        %1961 = vmatpush1.msra.mxu0 0.0
        %1962 = vmatprep.subr.mxu0 0.0
        %1963 = vmatpush1.msra.mxu0 0.0
        %1964 = vmatprep.subr.mxu0 0.0
        %1965 = vmatpush1.msra.mxu0 0.0
        %1966 = vmatprep.subr.mxu0 0.0
        %1967 = vmatpush1.msra.mxu0 0.0
        %1968 = vmatprep.subr.mxu0 0.0
        %1969 = vmatpush1.msra.mxu0 0.0
        %1970 = vmatprep.subr.mxu0 0.0
        %1971 = vmatpush1.msra.mxu0 0.0
        %1972 = vmatprep.subr.mxu0 0.0
        %1973 = vmatpush1.msra.mxu0 0.0
        %1974 = vmatprep.subr.mxu0 0.0
        %1975 = vmatpush1.msra.mxu0 0.0
        %1976 = vmatprep.subr.mxu0 0.0
        %1977 = vmatpush1.msra.mxu0 0.0
        %1978 = vmatprep.subr.mxu0 0.0
        %1979 = vmatpush1.msra.mxu0 0.0
        %1980 = vmatprep.subr.mxu0 0.0
        %1981 = vmatpush1.msra.mxu0 0.0
        %1982 = vmatprep.subr.mxu0 0.0
        %1983 = vmatpush1.msra.mxu0 0.0
        %1984 = vmatprep.mubr.f32.mxu0 0.0
        %1985 = vmatmul.mubr.f32.gmra.mrb[0].mxu0 %v1568
        %v1986 = vpop.f32.mrb[0].mxu0
        %v1987 = vadd.f32 0.0, %v1986
        %v1988 = vpop.f32.mrb[0].mxu0
        %v1989 = vadd.f32 0.0, %v1988
        %1990 = vmatprep.mubr.f32.mxu0 0.0
        %1991 = vmatmul.mubr.f32.gmra.mrb[0].mxu0 %v1571
        %v1992 = vpop.f32.mrb[0].mxu0
        %v1993 = vadd.f32 0.0, %v1992
        %v1994 = vpop.f32.mrb[0].mxu0
        %v1995 = vadd.f32 0.0, %v1994
        %1996 = vmatprep.mubr.f32.mxu0 0.0
        %1997 = vmatmul.mubr.f32.gmra.mrb[0].mxu0 %v1574
        %v1998 = vpop.f32.mrb[0].mxu0
        %v1999 = vadd.f32 0.0, %v1998
        %v2000 = vpop.f32.mrb[0].mxu0
        %v2001 = vadd.f32 0.0, %v2000
        %2002 = vmatprep.mubr.f32.mxu0 0.0
        %2003 = vmatmul.mubr.f32.gmra.mrb[0].mxu0 %v1577
        %v2004 = vpop.f32.mrb[0].mxu0
        %v2005 = vadd.f32 0.0, %v2004
        %v2006 = vpop.f32.mrb[0].mxu0
        %v2007 = vadd.f32 0.0, %v2006
        %2008 = vmatprep.mubr.f32.mxu0 0.0
        %2009 = vmatmul.mubr.f32.gmra.mrb[0].mxu0 %v1580
        %v2010 = vpop.f32.mrb[0].mxu0
        %v2011 = vadd.f32 0.0, %v2010
        %v2012 = vpop.f32.mrb[0].mxu0
        %v2013 = vadd.f32 0.0, %v2012
        %2014 = vmatprep.mubr.f32.mxu0 0.0
        %2015 = vmatmul.mubr.f32.gmra.mrb[0].mxu0 %v1583
        %v2016 = vpop.f32.mrb[0].mxu0
        %v2017 = vadd.f32 0.0, %v2016
        %v2018 = vpop.f32.mrb[0].mxu0
        %v2019 = vadd.f32 0.0, %v2018
        %2020 = vmatprep.mubr.f32.mxu0 0.0
        %2021 = vmatmul.mubr.f32.gmra.mrb[0].mxu0 %v1586
        %v2022 = vpop.f32.mrb[0].mxu0
        %v2023 = vadd.f32 0.0, %v2022
        %v2024 = vpop.f32.mrb[0].mxu0
        %v2025 = vadd.f32 0.0, %v2024
        %2026 = vmatprep.mubr.f32.mxu0 0.0
        %2027 = vmatmul.mubr.f32.gmra.mrb[0].mxu0 %v1589
        %v2028 = vpop.f32.mrb[0].mxu0
        %v2029 = vadd.f32 0.0, %v2028
        %v2030 = vpop.f32.mrb[0].mxu0
        %v2031 = vadd.f32 0.0, %v2030
        %2032 = vmatprep.mubr.f32.mxu0 0.0
        %2033 = vmatmul.mubr.f32.gmra.mrb[0].mxu0 %v1592
        %v2034 = vpop.f32.mrb[0].mxu0
        %v2035 = vadd.f32 0.0, %v2034
        %v2036 = vpop.f32.mrb[0].mxu0
        %v2037 = vadd.f32 0.0, %v2036
        %2038 = vmatprep.mubr.f32.mxu0 0.0
        %2039 = vmatmul.mubr.f32.gmra.mrb[0].mxu0 %v1595
        %v2040 = vpop.f32.mrb[0].mxu0
        %v2041 = vadd.f32 0.0, %v2040
        %v2042 = vpop.f32.mrb[0].mxu0
        %v2043 = vadd.f32 0.0, %v2042
        %2044 = vmatprep.mubr.f32.mxu0 0.0
        %2045 = vmatmul.mubr.f32.gmra.mrb[0].mxu0 %v1598
        %v2046 = vpop.f32.mrb[0].mxu0
        %v2047 = vadd.f32 0.0, %v2046
        %v2048 = vpop.f32.mrb[0].mxu0
        %v2049 = vadd.f32 0.0, %v2048
        %2050 = vmatprep.mubr.f32.mxu0 0.0
        %2051 = vmatmul.mubr.f32.gmra.mrb[0].mxu0 %v1601
        %v2052 = vpop.f32.mrb[0].mxu0
        %v2053 = vadd.f32 0.0, %v2052
        %v2054 = vpop.f32.mrb[0].mxu0
        %v2055 = vadd.f32 0.0, %v2054
        %2056 = vmatprep.mubr.f32.mxu0 0.0
        %2057 = vmatmul.mubr.f32.gmra.mrb[0].mxu0 %v1604
        %v2058 = vpop.f32.mrb[0].mxu0
        %v2059 = vadd.f32 0.0, %v2058
        %v2060 = vpop.f32.mrb[0].mxu0
        %v2061 = vadd.f32 0.0, %v2060
        %2062 = vmatprep.mubr.f32.mxu0 0.0
        %2063 = vmatmul.mubr.f32.gmra.mrb[0].mxu0 %v1607
        %v2064 = vpop.f32.mrb[0].mxu0
        %v2065 = vadd.f32 0.0, %v2064
        %v2066 = vpop.f32.mrb[0].mxu0
        %v2067 = vadd.f32 0.0, %v2066
        %2068 = vmatprep.mubr.f32.mxu0 0.0
        %2069 = vmatmul.mubr.f32.gmra.mrb[0].mxu0 %v1610
        %v2070 = vpop.f32.mrb[0].mxu0
        %v2071 = vadd.f32 0.0, %v2070
        %v2072 = vpop.f32.mrb[0].mxu0
        %v2073 = vadd.f32 0.0, %v2072
        %2074 = vmatprep.mubr.f32.mxu0 0.0
        %2075 = vmatmul.mubr.f32.gmra.mrb[0].mxu0 %v1613
        %v2076 = vpop.f32.mrb[0].mxu0
        %v2077 = vadd.f32 0.0, %v2076
        %v2078 = vpop.f32.mrb[0].mxu0
        %v2079 = vadd.f32 0.0, %v2078
        %2080 = vmatprep.mubr.f32.mxu0 0.0
        %2081 = vmatmul.mubr.f32.gmra.mrb[0].mxu0 %v1616
        %v2082 = vpop.f32.mrb[0].mxu0
        %v2083 = vadd.f32 0.0, %v2082
        %v2084 = vpop.f32.mrb[0].mxu0
        %v2085 = vadd.f32 0.0, %v2084
        %2086 = vmatprep.mubr.f32.mxu0 0.0
        %2087 = vmatmul.mubr.f32.gmra.mrb[0].mxu0 %v1619
        %v2088 = vpop.f32.mrb[0].mxu0
        %v2089 = vadd.f32 0.0, %v2088
        %v2090 = vpop.f32.mrb[0].mxu0
        %v2091 = vadd.f32 0.0, %v2090
        %2092 = vmatprep.mubr.f32.mxu0 0.0
        %2093 = vmatmul.mubr.f32.gmra.mrb[0].mxu0 %v1622
        %v2094 = vpop.f32.mrb[0].mxu0
        %v2095 = vadd.f32 0.0, %v2094
        %v2096 = vpop.f32.mrb[0].mxu0
        %v2097 = vadd.f32 0.0, %v2096
        %2098 = vmatprep.mubr.f32.mxu0 0.0
        %2099 = vmatmul.mubr.f32.gmra.mrb[0].mxu0 %v1625
        %v2100 = vpop.f32.mrb[0].mxu0
        %v2101 = vadd.f32 0.0, %v2100
        %v2102 = vpop.f32.mrb[0].mxu0
        %v2103 = vadd.f32 0.0, %v2102
        %2104 = vmatprep.mubr.f32.mxu0 0.0
        %2105 = vmatmul.mubr.f32.gmra.mrb[0].mxu0 %v1628
        %v2106 = vpop.f32.mrb[0].mxu0
        %v2107 = vadd.f32 0.0, %v2106
        %v2108 = vpop.f32.mrb[0].mxu0
        %v2109 = vadd.f32 0.0, %v2108
        %2110 = vmatprep.mubr.f32.mxu0 0.0
        %2111 = vmatmul.mubr.f32.gmra.mrb[0].mxu0 %v1631
        %v2112 = vpop.f32.mrb[0].mxu0
        %v2113 = vadd.f32 0.0, %v2112
        %v2114 = vpop.f32.mrb[0].mxu0
        %v2115 = vadd.f32 0.0, %v2114
        %2116 = vmatprep.mubr.f32.mxu0 0.0
        %2117 = vmatmul.mubr.f32.gmra.mrb[0].mxu0 %v1634
        %v2118 = vpop.f32.mrb[0].mxu0
        %v2119 = vadd.f32 0.0, %v2118
        %v2120 = vpop.f32.mrb[0].mxu0
        %v2121 = vadd.f32 0.0, %v2120
        %2122 = vmatprep.mubr.f32.mxu0 0.0
        %2123 = vmatmul.mubr.f32.gmra.mrb[0].mxu0 %v1637
        %v2124 = vpop.f32.mrb[0].mxu0
        %v2125 = vadd.f32 0.0, %v2124
        %v2126 = vpop.f32.mrb[0].mxu0
        %v2127 = vadd.f32 0.0, %v2126
        %2128 = vmatprep.mubr.f32.mxu0 0.0
        %2129 = vmatmul.mubr.f32.gmra.mrb[0].mxu0 %v1640
        %v2130 = vpop.f32.mrb[0].mxu0
        %v2131 = vadd.f32 0.0, %v2130
        %v2132 = vpop.f32.mrb[0].mxu0
        %v2133 = vadd.f32 0.0, %v2132
        %2134 = vmatprep.mubr.f32.mxu0 0.0
        %2135 = vmatmul.mubr.f32.gmra.mrb[0].mxu0 %v1643
        %v2136 = vpop.f32.mrb[0].mxu0
        %v2137 = vadd.f32 0.0, %v2136
        %v2138 = vpop.f32.mrb[0].mxu0
        %v2139 = vadd.f32 0.0, %v2138
        %2140 = vmatprep.mubr.f32.mxu0 0.0
        %2141 = vmatmul.mubr.f32.gmra.mrb[0].mxu0 %v1646
        %v2142 = vpop.f32.mrb[0].mxu0
        %v2143 = vadd.f32 0.0, %v2142
        %v2144 = vpop.f32.mrb[0].mxu0
        %v2145 = vadd.f32 0.0, %v2144
        %2146 = vmatprep.mubr.f32.mxu0 0.0
        %2147 = vmatmul.mubr.f32.gmra.mrb[0].mxu0 %v1649
        %v2148 = vpop.f32.mrb[0].mxu0
        %v2149 = vadd.f32 0.0, %v2148
        %v2150 = vpop.f32.mrb[0].mxu0
        %v2151 = vadd.f32 0.0, %v2150
        %2152 = vmatprep.mubr.f32.mxu0 0.0
        %2153 = vmatmul.mubr.f32.gmra.mrb[0].mxu0 %v1652
        %v2154 = vpop.f32.mrb[0].mxu0
        %v2155 = vadd.f32 0.0, %v2154
        %v2156 = vpop.f32.mrb[0].mxu0
        %v2157 = vadd.f32 0.0, %v2156
        %2158 = vmatprep.mubr.f32.mxu0 0.0
        %2159 = vmatmul.mubr.f32.gmra.mrb[0].mxu0 %v1655
        %v2160 = vpop.f32.mrb[0].mxu0
        %v2161 = vadd.f32 0.0, %v2160
        %v2162 = vpop.f32.mrb[0].mxu0
        %v2163 = vadd.f32 0.0, %v2162
        %2164 = vmatprep.mubr.f32.mxu0 0.0
        %2165 = vmatmul.mubr.f32.gmra.mrb[0].mxu0 %v1658
        %v2166 = vpop.f32.mrb[0].mxu0
        %v2167 = vadd.f32 0.0, %v2166
        %v2168 = vpop.f32.mrb[0].mxu0
        %v2169 = vadd.f32 0.0, %v2168
        %2170 = vmatprep.mubr.f32.mxu0 0.0
        %2171 = vmatmul.mubr.f32.gmra.mrb[0].mxu0 %v1661
        %v2172 = vpop.f32.mrb[0].mxu0
        %v2173 = vadd.f32 0.0, %v2172
        %v2174 = vpop.f32.mrb[0].mxu0
        %v2175 = vadd.f32 0.0, %v2174
        %2176 = vdwg.mxu0
        %v2177 = vadd.f32 %v1403, %v1730
        %v2178 = vadd.f32 %v1404, %v1732
        %v2179 = vadd.f32 %v1405, %v1987
        %v2180 = vadd.f32 %v1406, %v1989
        %v2181 = vadd.f32 %v1407, %v1736
        %v2182 = vadd.f32 %v1408, %v1738
        %v2183 = vadd.f32 %v1409, %v1993
        %v2184 = vadd.f32 %v1410, %v1995
        %v2185 = vadd.f32 %v1411, %v1742
        %v2186 = vadd.f32 %v1412, %v1744
        %v2187 = vadd.f32 %v1413, %v1999
        %v2188 = vadd.f32 %v1414, %v2001
        %v2189 = vadd.f32 %v1415, %v1748
        %v2190 = vadd.f32 %v1416, %v1750
        %v2191 = vadd.f32 %v1417, %v2005
        %v2192 = vadd.f32 %v1418, %v2007
        %v2193 = vadd.f32 %v1419, %v1754
        %v2194 = vadd.f32 %v1420, %v1756
        %v2195 = vadd.f32 %v1421, %v2011
        %v2196 = vadd.f32 %v1422, %v2013
        %v2197 = vadd.f32 %v1423, %v1760
        %v2198 = vadd.f32 %v1424, %v1762
        %v2199 = vadd.f32 %v1425, %v2017
        %v2200 = vadd.f32 %v1426, %v2019
        %v2201 = vadd.f32 %v1427, %v1766
        %v2202 = vadd.f32 %v1428, %v1768
        %v2203 = vadd.f32 %v1429, %v2023
        %v2204 = vadd.f32 %v1430, %v2025
        %v2205 = vadd.f32 %v1431, %v1772
        %v2206 = vadd.f32 %v1432, %v1774
        %v2207 = vadd.f32 %v1433, %v2029
        %v2208 = vadd.f32 %v1434, %v2031
        %v2209 = vadd.f32 %v1435, %v1778
        %v2210 = vadd.f32 %v1436, %v1780
        %v2211 = vadd.f32 %v1437, %v2035
        %v2212 = vadd.f32 %v1438, %v2037
        %v2213 = vadd.f32 %v1439, %v1784
        %v2214 = vadd.f32 %v1440, %v1786
        %v2215 = vadd.f32 %v1441, %v2041
        %v2216 = vadd.f32 %v1442, %v2043
        %v2217 = vadd.f32 %v1443, %v1790
        %v2218 = vadd.f32 %v1444, %v1792
        %v2219 = vadd.f32 %v1445, %v2047
        %v2220 = vadd.f32 %v1446, %v2049
        %v2221 = vadd.f32 %v1447, %v1796
        %v2222 = vadd.f32 %v1448, %v1798
        %v2223 = vadd.f32 %v1449, %v2053
        %v2224 = vadd.f32 %v1450, %v2055
        %v2225 = vadd.f32 %v1451, %v1802
        %v2226 = vadd.f32 %v1452, %v1804
        %v2227 = vadd.f32 %v1453, %v2059
        %v2228 = vadd.f32 %v1454, %v2061
        %v2229 = vadd.f32 %v1455, %v1808
        %v2230 = vadd.f32 %v1456, %v1810
        %v2231 = vadd.f32 %v1457, %v2065
        %v2232 = vadd.f32 %v1458, %v2067
        %v2233 = vadd.f32 %v1459, %v1814
        %v2234 = vadd.f32 %v1460, %v1816
        %v2235 = vadd.f32 %v1461, %v2071
        %v2236 = vadd.f32 %v1462, %v2073
        %v2237 = vadd.f32 %v1463, %v1820
        %v2238 = vadd.f32 %v1464, %v1822
        %v2239 = vadd.f32 %v1465, %v2077
        %v2240 = vadd.f32 %v1466, %v2079
        %v2241 = vadd.f32 %v1467, %v1826
        %v2242 = vadd.f32 %v1468, %v1828
        %v2243 = vadd.f32 %v1469, %v2083
        %v2244 = vadd.f32 %v1470, %v2085
        %v2245 = vadd.f32 %v1471, %v1832
        %v2246 = vadd.f32 %v1472, %v1834
        %v2247 = vadd.f32 %v1473, %v2089
        %v2248 = vadd.f32 %v1474, %v2091
        %v2249 = vadd.f32 %v1475, %v1838
        %v2250 = vadd.f32 %v1476, %v1840
        %v2251 = vadd.f32 %v1477, %v2095
        %v2252 = vadd.f32 %v1478, %v2097
        %v2253 = vadd.f32 %v1479, %v1844
        %v2254 = vadd.f32 %v1480, %v1846
        %v2255 = vadd.f32 %v1481, %v2101
        %v2256 = vadd.f32 %v1482, %v2103
        %v2257 = vadd.f32 %v1483, %v1850
        %v2258 = vadd.f32 %v1484, %v1852
        %v2259 = vadd.f32 %v1485, %v2107
        %v2260 = vadd.f32 %v1486, %v2109
        %v2261 = vadd.f32 %v1487, %v1856
        %v2262 = vadd.f32 %v1488, %v1858
        %v2263 = vadd.f32 %v1489, %v2113
        %v2264 = vadd.f32 %v1490, %v2115
        %v2265 = vadd.f32 %v1491, %v1862
        %v2266 = vadd.f32 %v1492, %v1864
        %v2267 = vadd.f32 %v1493, %v2119
        %v2268 = vadd.f32 %v1494, %v2121
        %v2269 = vadd.f32 %v1495, %v1868
        %v2270 = vadd.f32 %v1496, %v1870
        %v2271 = vadd.f32 %v1497, %v2125
        %v2272 = vadd.f32 %v1498, %v2127
        %v2273 = vadd.f32 %v1499, %v1874
        %v2274 = vadd.f32 %v1500, %v1876
        %v2275 = vadd.f32 %v1501, %v2131
        %v2276 = vadd.f32 %v1502, %v2133
        %v2277 = vadd.f32 %v1503, %v1880
        %v2278 = vadd.f32 %v1504, %v1882
        %v2279 = vadd.f32 %v1505, %v2137
        %v2280 = vadd.f32 %v1506, %v2139
        %v2281 = vadd.f32 %v1507, %v1886
        %v2282 = vadd.f32 %v1508, %v1888
        %v2283 = vadd.f32 %v1509, %v2143
        %v2284 = vadd.f32 %v1510, %v2145
        %v2285 = vadd.f32 %v1511, %v1892
        %v2286 = vadd.f32 %v1512, %v1894
        %v2287 = vadd.f32 %v1513, %v2149
        %v2288 = vadd.f32 %v1514, %v2151
        %v2289 = vadd.f32 %v1515, %v1898
        %v2290 = vadd.f32 %v1516, %v1900
        %v2291 = vadd.f32 %v1517, %v2155
        %v2292 = vadd.f32 %v1518, %v2157
        %v2293 = vadd.f32 %v1519, %v1904
        %v2294 = vadd.f32 %v1520, %v1906
        %v2295 = vadd.f32 %v1521, %v2161
        %v2296 = vadd.f32 %v1522, %v2163
        %v2297 = vadd.f32 %v1523, %v1910
        %v2298 = vadd.f32 %v1524, %v1912
        %v2299 = vadd.f32 %v1525, %v2167
        %v2300 = vadd.f32 %v1526, %v2169
        %v2301 = vadd.f32 %v1527, %v1916
        %v2302 = vadd.f32 %v1528, %v1918
        %v2303 = vadd.f32 %v1529, %v2173
        %v2304 = vadd.f32 %v1530, %v2175
        %v2305 = vld [vmem:[%s495] sm:$0xff]
        %v2306 = vld [vmem:[%s495 + $0x8] sm:$0xff]
        %v2307 = vld [vmem:[%s495 + $0x10] sm:$0xff]
        %v2308 = vld [vmem:[%s495 + $0x18] sm:$0xff]
        %v2309 = vld [vmem:[%s495 + $0x20] sm:$0xff]
        %v2310 = vld [vmem:[%s495 + $0x28] sm:$0xff]
        %v2311 = vld [vmem:[%s495 + $0x30] sm:$0xff]
        %v2312 = vld [vmem:[%s495 + $0x38] sm:$0xff]
        %v2313 = vld [vmem:[%s495 + $0x40] sm:$0xff]
        %v2314 = vld [vmem:[%s495 + $0x48] sm:$0xff]
        %v2315 = vld [vmem:[%s495 + $0x50] sm:$0xff]
        %v2316 = vld [vmem:[%s495 + $0x58] sm:$0xff]
        %v2317 = vld [vmem:[%s495 + $0x60] sm:$0xff]
        %v2318 = vld [vmem:[%s495 + $0x68] sm:$0xff]
        %v2319 = vld [vmem:[%s495 + $0x70] sm:$0xff]
        %v2320 = vld [vmem:[%s495 + $0x78] sm:$0xff]
        %v2321 = vld [vmem:[%s495 + $0x80] sm:$0xff]
        %v2322 = vld [vmem:[%s495 + $0x88] sm:$0xff]
        %v2323 = vld [vmem:[%s495 + $0x90] sm:$0xff]
        %v2324 = vld [vmem:[%s495 + $0x98] sm:$0xff]
        %v2325 = vld [vmem:[%s495 + $0xa0] sm:$0xff]
        %v2326 = vld [vmem:[%s495 + $0xa8] sm:$0xff]
        %v2327 = vld [vmem:[%s495 + $0xb0] sm:$0xff]
        %v2328 = vld [vmem:[%s495 + $0xb8] sm:$0xff]
        %v2329 = vld [vmem:[%s495 + $0xc0] sm:$0xff]
        %v2330 = vld [vmem:[%s495 + $0xc8] sm:$0xff]
        %v2331 = vld [vmem:[%s495 + $0xd0] sm:$0xff]
        %v2332 = vld [vmem:[%s495 + $0xd8] sm:$0xff]
        %v2333 = vld [vmem:[%s495 + $0xe0] sm:$0xff]
        %v2334 = vld [vmem:[%s495 + $0xe8] sm:$0xff]
        %v2335 = vld [vmem:[%s495 + $0xf0] sm:$0xff]
        %v2336 = vld [vmem:[%s495 + $0xf8] sm:$0xff]
        %v2337 = vld [vmem:[%s414] sm:$0xf]
        %2339 = vset.pattern.permute.xlu0 0
        %2340 = vperm.xlu0 %2339, %v2305
        %v2341 = vpop.permute.xlu0 %2340
        %2344 = vset.pattern.permute.xlu0 0
        %2345 = vperm.xlu0 %2344, %v2306
        %v2346 = vpop.permute.xlu0 %2345
        %2349 = vset.pattern.permute.xlu0 0
        %2350 = vperm.xlu0 %2349, %v2307
        %v2351 = vpop.permute.xlu0 %2350
        %2354 = vset.pattern.permute.xlu0 0
        %2355 = vperm.xlu0 %2354, %v2308
        %v2356 = vpop.permute.xlu0 %2355
        %2359 = vset.pattern.permute.xlu0 0
        %2360 = vperm.xlu0 %2359, %v2309
        %v2361 = vpop.permute.xlu0 %2360
        %2364 = vset.pattern.permute.xlu0 0
        %2365 = vperm.xlu0 %2364, %v2310
        %v2366 = vpop.permute.xlu0 %2365
        %2369 = vset.pattern.permute.xlu0 0
        %2370 = vperm.xlu0 %2369, %v2311
        %v2371 = vpop.permute.xlu0 %2370
        %2374 = vset.pattern.permute.xlu0 0
        %2375 = vperm.xlu0 %2374, %v2312
        %v2376 = vpop.permute.xlu0 %2375
        %2379 = vset.pattern.permute.xlu0 0
        %2380 = vperm.xlu0 %2379, %v2313
        %v2381 = vpop.permute.xlu0 %2380
        %2384 = vset.pattern.permute.xlu0 0
        %2385 = vperm.xlu0 %2384, %v2314
        %v2386 = vpop.permute.xlu0 %2385
        %2389 = vset.pattern.permute.xlu0 0
        %2390 = vperm.xlu0 %2389, %v2315
        %v2391 = vpop.permute.xlu0 %2390
        %2394 = vset.pattern.permute.xlu0 0
        %2395 = vperm.xlu0 %2394, %v2316
        %v2396 = vpop.permute.xlu0 %2395
        %2399 = vset.pattern.permute.xlu0 0
        %2400 = vperm.xlu0 %2399, %v2317
        %v2401 = vpop.permute.xlu0 %2400
        %2404 = vset.pattern.permute.xlu0 0
        %2405 = vperm.xlu0 %2404, %v2318
        %v2406 = vpop.permute.xlu0 %2405
        %2409 = vset.pattern.permute.xlu0 0
        %2410 = vperm.xlu0 %2409, %v2319
        %v2411 = vpop.permute.xlu0 %2410
        %2414 = vset.pattern.permute.xlu0 0
        %2415 = vperm.xlu0 %2414, %v2320
        %v2416 = vpop.permute.xlu0 %2415
        %2419 = vset.pattern.permute.xlu0 0
        %2420 = vperm.xlu0 %2419, %v2321
        %v2421 = vpop.permute.xlu0 %2420
        %2424 = vset.pattern.permute.xlu0 0
        %2425 = vperm.xlu0 %2424, %v2322
        %v2426 = vpop.permute.xlu0 %2425
        %2429 = vset.pattern.permute.xlu0 0
        %2430 = vperm.xlu0 %2429, %v2323
        %v2431 = vpop.permute.xlu0 %2430
        %2434 = vset.pattern.permute.xlu0 0
        %2435 = vperm.xlu0 %2434, %v2324
        %v2436 = vpop.permute.xlu0 %2435
        %2439 = vset.pattern.permute.xlu0 0
        %2440 = vperm.xlu0 %2439, %v2325
        %v2441 = vpop.permute.xlu0 %2440
        %2444 = vset.pattern.permute.xlu0 0
        %2445 = vperm.xlu0 %2444, %v2326
        %v2446 = vpop.permute.xlu0 %2445
        %2449 = vset.pattern.permute.xlu0 0
        %2450 = vperm.xlu0 %2449, %v2327
        %v2451 = vpop.permute.xlu0 %2450
        %2454 = vset.pattern.permute.xlu0 0
        %2455 = vperm.xlu0 %2454, %v2328
        %v2456 = vpop.permute.xlu0 %2455
        %2459 = vset.pattern.permute.xlu0 0
        %2460 = vperm.xlu0 %2459, %v2329
        %v2461 = vpop.permute.xlu0 %2460
        %2464 = vset.pattern.permute.xlu0 0
        %2465 = vperm.xlu0 %2464, %v2330
        %v2466 = vpop.permute.xlu0 %2465
        %2469 = vset.pattern.permute.xlu0 0
        %2470 = vperm.xlu0 %2469, %v2331
        %v2471 = vpop.permute.xlu0 %2470
        %2474 = vset.pattern.permute.xlu0 0
        %2475 = vperm.xlu0 %2474, %v2332
        %v2476 = vpop.permute.xlu0 %2475
        %2479 = vset.pattern.permute.xlu0 0
        %2480 = vperm.xlu0 %2479, %v2333
        %v2481 = vpop.permute.xlu0 %2480
        %2484 = vset.pattern.permute.xlu0 0
        %2485 = vperm.xlu0 %2484, %v2334
        %v2486 = vpop.permute.xlu0 %2485
        %2489 = vset.pattern.permute.xlu0 0
        %2490 = vperm.xlu0 %2489, %v2335
        %v2491 = vpop.permute.xlu0 %2490
        %2494 = vset.pattern.permute.xlu0 0
        %2495 = vperm.xlu0 %2494, %v2336
        %v2496 = vpop.permute.xlu0 %2495
        %v2499 = vlaneseq
        %v2500 = vshrl.u32 %v2499, 7
        %v2501 = vsub.s32 0, %v2500
        %v2502 = vrot.slane %v2337, %v2501
        %v2503 = vlaneseq
        %v2504 = vshrl.u32 %v2503, 7
        %v2505 = vsub.s32 1, %v2504
        %v2506 = vrot.slane %v2337, %v2505
        %v2507 = vlaneseq
        %v2508 = vshrl.u32 %v2507, 7
        %v2509 = vsub.s32 2, %v2508
        %v2510 = vrot.slane %v2337, %v2509
        %v2511 = vlaneseq
        %v2512 = vshrl.u32 %v2511, 7
        %v2513 = vsub.s32 3, %v2512
        %v2514 = vrot.slane %v2337, %v2513
        %v2519 = vadd.f32 %v2341, %v2502
        %v2520 = vadd.f32 %v2341, %v2506
        %v2521 = vadd.f32 %v2341, %v2510
        %v2522 = vadd.f32 %v2341, %v2514
        %v2523 = vadd.f32 %v2346, %v2502
        %v2524 = vadd.f32 %v2346, %v2506
        %v2525 = vadd.f32 %v2346, %v2510
        %v2526 = vadd.f32 %v2346, %v2514
        %v2527 = vadd.f32 %v2351, %v2502
        %v2528 = vadd.f32 %v2351, %v2506
        %v2529 = vadd.f32 %v2351, %v2510
        %v2530 = vadd.f32 %v2351, %v2514
        %v2531 = vadd.f32 %v2356, %v2502
        %v2532 = vadd.f32 %v2356, %v2506
        %v2533 = vadd.f32 %v2356, %v2510
        %v2534 = vadd.f32 %v2356, %v2514
        %v2535 = vadd.f32 %v2361, %v2502
        %v2536 = vadd.f32 %v2361, %v2506
        %v2537 = vadd.f32 %v2361, %v2510
        %v2538 = vadd.f32 %v2361, %v2514
        %v2539 = vadd.f32 %v2366, %v2502
        %v2540 = vadd.f32 %v2366, %v2506
        %v2541 = vadd.f32 %v2366, %v2510
        %v2542 = vadd.f32 %v2366, %v2514
        %v2543 = vadd.f32 %v2371, %v2502
        %v2544 = vadd.f32 %v2371, %v2506
        %v2545 = vadd.f32 %v2371, %v2510
        %v2546 = vadd.f32 %v2371, %v2514
        %v2547 = vadd.f32 %v2376, %v2502
        %v2548 = vadd.f32 %v2376, %v2506
        %v2549 = vadd.f32 %v2376, %v2510
        %v2550 = vadd.f32 %v2376, %v2514
        %v2551 = vadd.f32 %v2381, %v2502
        %v2552 = vadd.f32 %v2381, %v2506
        %v2553 = vadd.f32 %v2381, %v2510
        %v2554 = vadd.f32 %v2381, %v2514
        %v2555 = vadd.f32 %v2386, %v2502
        %v2556 = vadd.f32 %v2386, %v2506
        %v2557 = vadd.f32 %v2386, %v2510
        %v2558 = vadd.f32 %v2386, %v2514
        %v2559 = vadd.f32 %v2391, %v2502
        %v2560 = vadd.f32 %v2391, %v2506
        %v2561 = vadd.f32 %v2391, %v2510
        %v2562 = vadd.f32 %v2391, %v2514
        %v2563 = vadd.f32 %v2396, %v2502
        %v2564 = vadd.f32 %v2396, %v2506
        %v2565 = vadd.f32 %v2396, %v2510
        %v2566 = vadd.f32 %v2396, %v2514
        %v2567 = vadd.f32 %v2401, %v2502
        %v2568 = vadd.f32 %v2401, %v2506
        %v2569 = vadd.f32 %v2401, %v2510
        %v2570 = vadd.f32 %v2401, %v2514
        %v2571 = vadd.f32 %v2406, %v2502
        %v2572 = vadd.f32 %v2406, %v2506
        %v2573 = vadd.f32 %v2406, %v2510
        %v2574 = vadd.f32 %v2406, %v2514
        %v2575 = vadd.f32 %v2411, %v2502
        %v2576 = vadd.f32 %v2411, %v2506
        %v2577 = vadd.f32 %v2411, %v2510
        %v2578 = vadd.f32 %v2411, %v2514
        %v2579 = vadd.f32 %v2416, %v2502
        %v2580 = vadd.f32 %v2416, %v2506
        %v2581 = vadd.f32 %v2416, %v2510
        %v2582 = vadd.f32 %v2416, %v2514
        %v2583 = vadd.f32 %v2421, %v2502
        %v2584 = vadd.f32 %v2421, %v2506
        %v2585 = vadd.f32 %v2421, %v2510
        %v2586 = vadd.f32 %v2421, %v2514
        %v2587 = vadd.f32 %v2426, %v2502
        %v2588 = vadd.f32 %v2426, %v2506
        %v2589 = vadd.f32 %v2426, %v2510
        %v2590 = vadd.f32 %v2426, %v2514
        %v2591 = vadd.f32 %v2431, %v2502
        %v2592 = vadd.f32 %v2431, %v2506
        %v2593 = vadd.f32 %v2431, %v2510
        %v2594 = vadd.f32 %v2431, %v2514
        %v2595 = vadd.f32 %v2436, %v2502
        %v2596 = vadd.f32 %v2436, %v2506
        %v2597 = vadd.f32 %v2436, %v2510
        %v2598 = vadd.f32 %v2436, %v2514
        %v2599 = vadd.f32 %v2441, %v2502
        %v2600 = vadd.f32 %v2441, %v2506
        %v2601 = vadd.f32 %v2441, %v2510
        %v2602 = vadd.f32 %v2441, %v2514
        %v2603 = vadd.f32 %v2446, %v2502
        %v2604 = vadd.f32 %v2446, %v2506
        %v2605 = vadd.f32 %v2446, %v2510
        %v2606 = vadd.f32 %v2446, %v2514
        %v2607 = vadd.f32 %v2451, %v2502
        %v2608 = vadd.f32 %v2451, %v2506
        %v2609 = vadd.f32 %v2451, %v2510
        %v2610 = vadd.f32 %v2451, %v2514
        %v2611 = vadd.f32 %v2456, %v2502
        %v2612 = vadd.f32 %v2456, %v2506
        %v2613 = vadd.f32 %v2456, %v2510
        %v2614 = vadd.f32 %v2456, %v2514
        %v2615 = vadd.f32 %v2461, %v2502
        %v2616 = vadd.f32 %v2461, %v2506
        %v2617 = vadd.f32 %v2461, %v2510
        %v2618 = vadd.f32 %v2461, %v2514
        %v2619 = vadd.f32 %v2466, %v2502
        %v2620 = vadd.f32 %v2466, %v2506
        %v2621 = vadd.f32 %v2466, %v2510
        %v2622 = vadd.f32 %v2466, %v2514
        %v2623 = vadd.f32 %v2471, %v2502
        %v2624 = vadd.f32 %v2471, %v2506
        %v2625 = vadd.f32 %v2471, %v2510
        %v2626 = vadd.f32 %v2471, %v2514
        %v2627 = vadd.f32 %v2476, %v2502
        %v2628 = vadd.f32 %v2476, %v2506
        %v2629 = vadd.f32 %v2476, %v2510
        %v2630 = vadd.f32 %v2476, %v2514
        %v2631 = vadd.f32 %v2481, %v2502
        %v2632 = vadd.f32 %v2481, %v2506
        %v2633 = vadd.f32 %v2481, %v2510
        %v2634 = vadd.f32 %v2481, %v2514
        %v2635 = vadd.f32 %v2486, %v2502
        %v2636 = vadd.f32 %v2486, %v2506
        %v2637 = vadd.f32 %v2486, %v2510
        %v2638 = vadd.f32 %v2486, %v2514
        %v2639 = vadd.f32 %v2491, %v2502
        %v2640 = vadd.f32 %v2491, %v2506
        %v2641 = vadd.f32 %v2491, %v2510
        %v2642 = vadd.f32 %v2491, %v2514
        %v2643 = vadd.f32 %v2496, %v2502
        %v2644 = vadd.f32 %v2496, %v2506
        %v2645 = vadd.f32 %v2496, %v2510
        %v2646 = vadd.f32 %v2496, %v2514
        %v2647 = vadd.f32 %v2177, %v2519
        %v2648 = vadd.f32 %v2178, %v2520
        %v2649 = vadd.f32 %v2179, %v2521
        %v2650 = vadd.f32 %v2180, %v2522
        %v2651 = vadd.f32 %v2181, %v2523
        %v2652 = vadd.f32 %v2182, %v2524
        %v2653 = vadd.f32 %v2183, %v2525
        %v2654 = vadd.f32 %v2184, %v2526
        %v2655 = vadd.f32 %v2185, %v2527
        %v2656 = vadd.f32 %v2186, %v2528
        %v2657 = vadd.f32 %v2187, %v2529
        %v2658 = vadd.f32 %v2188, %v2530
        %v2659 = vadd.f32 %v2189, %v2531
        %v2660 = vadd.f32 %v2190, %v2532
        %v2661 = vadd.f32 %v2191, %v2533
        %v2662 = vadd.f32 %v2192, %v2534
        %v2663 = vadd.f32 %v2193, %v2535
        %v2664 = vadd.f32 %v2194, %v2536
        %v2665 = vadd.f32 %v2195, %v2537
        %v2666 = vadd.f32 %v2196, %v2538
        %v2667 = vadd.f32 %v2197, %v2539
        %v2668 = vadd.f32 %v2198, %v2540
        %v2669 = vadd.f32 %v2199, %v2541
        %v2670 = vadd.f32 %v2200, %v2542
        %v2671 = vadd.f32 %v2201, %v2543
        %v2672 = vadd.f32 %v2202, %v2544
        %v2673 = vadd.f32 %v2203, %v2545
        %v2674 = vadd.f32 %v2204, %v2546
        %v2675 = vadd.f32 %v2205, %v2547
        %v2676 = vadd.f32 %v2206, %v2548
        %v2677 = vadd.f32 %v2207, %v2549
        %v2678 = vadd.f32 %v2208, %v2550
        %v2679 = vadd.f32 %v2209, %v2551
        %v2680 = vadd.f32 %v2210, %v2552
        %v2681 = vadd.f32 %v2211, %v2553
        %v2682 = vadd.f32 %v2212, %v2554
        %v2683 = vadd.f32 %v2213, %v2555
        %v2684 = vadd.f32 %v2214, %v2556
        %v2685 = vadd.f32 %v2215, %v2557
        %v2686 = vadd.f32 %v2216, %v2558
        %v2687 = vadd.f32 %v2217, %v2559
        %v2688 = vadd.f32 %v2218, %v2560
        %v2689 = vadd.f32 %v2219, %v2561
        %v2690 = vadd.f32 %v2220, %v2562
        %v2691 = vadd.f32 %v2221, %v2563
        %v2692 = vadd.f32 %v2222, %v2564
        %v2693 = vadd.f32 %v2223, %v2565
        %v2694 = vadd.f32 %v2224, %v2566
        %v2695 = vadd.f32 %v2225, %v2567
        %v2696 = vadd.f32 %v2226, %v2568
        %v2697 = vadd.f32 %v2227, %v2569
        %v2698 = vadd.f32 %v2228, %v2570
        %v2699 = vadd.f32 %v2229, %v2571
        %v2700 = vadd.f32 %v2230, %v2572
        %v2701 = vadd.f32 %v2231, %v2573
        %v2702 = vadd.f32 %v2232, %v2574
        %v2703 = vadd.f32 %v2233, %v2575
        %v2704 = vadd.f32 %v2234, %v2576
        %v2705 = vadd.f32 %v2235, %v2577
        %v2706 = vadd.f32 %v2236, %v2578
        %v2707 = vadd.f32 %v2237, %v2579
        %v2708 = vadd.f32 %v2238, %v2580
        %v2709 = vadd.f32 %v2239, %v2581
        %v2710 = vadd.f32 %v2240, %v2582
        %v2711 = vadd.f32 %v2241, %v2583
        %v2712 = vadd.f32 %v2242, %v2584
        %v2713 = vadd.f32 %v2243, %v2585
        %v2714 = vadd.f32 %v2244, %v2586
        %v2715 = vadd.f32 %v2245, %v2587
        %v2716 = vadd.f32 %v2246, %v2588
        %v2717 = vadd.f32 %v2247, %v2589
        %v2718 = vadd.f32 %v2248, %v2590
        %v2719 = vadd.f32 %v2249, %v2591
        %v2720 = vadd.f32 %v2250, %v2592
        %v2721 = vadd.f32 %v2251, %v2593
        %v2722 = vadd.f32 %v2252, %v2594
        %v2723 = vadd.f32 %v2253, %v2595
        %v2724 = vadd.f32 %v2254, %v2596
        %v2725 = vadd.f32 %v2255, %v2597
        %v2726 = vadd.f32 %v2256, %v2598
        %v2727 = vadd.f32 %v2257, %v2599
        %v2728 = vadd.f32 %v2258, %v2600
        %v2729 = vadd.f32 %v2259, %v2601
        %v2730 = vadd.f32 %v2260, %v2602
        %v2731 = vadd.f32 %v2261, %v2603
        %v2732 = vadd.f32 %v2262, %v2604
        %v2733 = vadd.f32 %v2263, %v2605
        %v2734 = vadd.f32 %v2264, %v2606
        %v2735 = vadd.f32 %v2265, %v2607
        %v2736 = vadd.f32 %v2266, %v2608
        %v2737 = vadd.f32 %v2267, %v2609
        %v2738 = vadd.f32 %v2268, %v2610
        %v2739 = vadd.f32 %v2269, %v2611
        %v2740 = vadd.f32 %v2270, %v2612
        %v2741 = vadd.f32 %v2271, %v2613
        %v2742 = vadd.f32 %v2272, %v2614
        %v2743 = vadd.f32 %v2273, %v2615
        %v2744 = vadd.f32 %v2274, %v2616
        %v2745 = vadd.f32 %v2275, %v2617
        %v2746 = vadd.f32 %v2276, %v2618
        %v2747 = vadd.f32 %v2277, %v2619
        %v2748 = vadd.f32 %v2278, %v2620
        %v2749 = vadd.f32 %v2279, %v2621
        %v2750 = vadd.f32 %v2280, %v2622
        %v2751 = vadd.f32 %v2281, %v2623
        %v2752 = vadd.f32 %v2282, %v2624
        %v2753 = vadd.f32 %v2283, %v2625
        %v2754 = vadd.f32 %v2284, %v2626
        %v2755 = vadd.f32 %v2285, %v2627
        %v2756 = vadd.f32 %v2286, %v2628
        %v2757 = vadd.f32 %v2287, %v2629
        %v2758 = vadd.f32 %v2288, %v2630
        %v2759 = vadd.f32 %v2289, %v2631
        %v2760 = vadd.f32 %v2290, %v2632
        %v2761 = vadd.f32 %v2291, %v2633
        %v2762 = vadd.f32 %v2292, %v2634
        %v2763 = vadd.f32 %v2293, %v2635
        %v2764 = vadd.f32 %v2294, %v2636
        %v2765 = vadd.f32 %v2295, %v2637
        %v2766 = vadd.f32 %v2296, %v2638
        %v2767 = vadd.f32 %v2297, %v2639
        %v2768 = vadd.f32 %v2298, %v2640
        %v2769 = vadd.f32 %v2299, %v2641
        %v2770 = vadd.f32 %v2300, %v2642
        %v2771 = vadd.f32 %v2301, %v2643
        %v2772 = vadd.f32 %v2302, %v2644
        %v2773 = vadd.f32 %v2303, %v2645
        %v2774 = vadd.f32 %v2304, %v2646
        %2775 = vst [vmem:[%s474] sm:$0xff] %v2647
        %2776 = vst [vmem:[%s474 + $0x8] sm:$0xff] %v2648
        %2777 = vst [vmem:[%s474 + $0x10] sm:$0xff] %v2649
        %2778 = vst [vmem:[%s474 + $0x18] sm:$0xff] %v2650
        %2779 = vst [vmem:[%s474 + $0x20] sm:$0xff] %v2651
        %2780 = vst [vmem:[%s474 + $0x28] sm:$0xff] %v2652
        %2781 = vst [vmem:[%s474 + $0x30] sm:$0xff] %v2653
        %2782 = vst [vmem:[%s474 + $0x38] sm:$0xff] %v2654
        %2783 = vst [vmem:[%s474 + $0x40] sm:$0xff] %v2655
        %2784 = vst [vmem:[%s474 + $0x48] sm:$0xff] %v2656
        %2785 = vst [vmem:[%s474 + $0x50] sm:$0xff] %v2657
        %2786 = vst [vmem:[%s474 + $0x58] sm:$0xff] %v2658
        %2787 = vst [vmem:[%s474 + $0x60] sm:$0xff] %v2659
        %2788 = vst [vmem:[%s474 + $0x68] sm:$0xff] %v2660
        %2789 = vst [vmem:[%s474 + $0x70] sm:$0xff] %v2661
        %2790 = vst [vmem:[%s474 + $0x78] sm:$0xff] %v2662
        %2791 = vst [vmem:[%s474 + $0x80] sm:$0xff] %v2663
        %2792 = vst [vmem:[%s474 + $0x88] sm:$0xff] %v2664
        %2793 = vst [vmem:[%s474 + $0x90] sm:$0xff] %v2665
        %2794 = vst [vmem:[%s474 + $0x98] sm:$0xff] %v2666
        %2795 = vst [vmem:[%s474 + $0xa0] sm:$0xff] %v2667
        %2796 = vst [vmem:[%s474 + $0xa8] sm:$0xff] %v2668
        %2797 = vst [vmem:[%s474 + $0xb0] sm:$0xff] %v2669
        %2798 = vst [vmem:[%s474 + $0xb8] sm:$0xff] %v2670
        %2799 = vst [vmem:[%s474 + $0xc0] sm:$0xff] %v2671
        %2800 = vst [vmem:[%s474 + $0xc8] sm:$0xff] %v2672
        %2801 = vst [vmem:[%s474 + $0xd0] sm:$0xff] %v2673
        %2802 = vst [vmem:[%s474 + $0xd8] sm:$0xff] %v2674
        %2803 = vst [vmem:[%s474 + $0xe0] sm:$0xff] %v2675
        %2804 = vst [vmem:[%s474 + $0xe8] sm:$0xff] %v2676
        %2805 = vst [vmem:[%s474 + $0xf0] sm:$0xff] %v2677
        %2806 = vst [vmem:[%s474 + $0xf8] sm:$0xff] %v2678
        %2807 = vst [vmem:[%s474 + $0x100] sm:$0xff] %v2679
        %2808 = vst [vmem:[%s474 + $0x108] sm:$0xff] %v2680
        %2809 = vst [vmem:[%s474 + $0x110] sm:$0xff] %v2681
        %2810 = vst [vmem:[%s474 + $0x118] sm:$0xff] %v2682
        %2811 = vst [vmem:[%s474 + $0x120] sm:$0xff] %v2683
        %2812 = vst [vmem:[%s474 + $0x128] sm:$0xff] %v2684
        %2813 = vst [vmem:[%s474 + $0x130] sm:$0xff] %v2685
        %2814 = vst [vmem:[%s474 + $0x138] sm:$0xff] %v2686
        %2815 = vst [vmem:[%s474 + $0x140] sm:$0xff] %v2687
        %2816 = vst [vmem:[%s474 + $0x148] sm:$0xff] %v2688
        %2817 = vst [vmem:[%s474 + $0x150] sm:$0xff] %v2689
        %2818 = vst [vmem:[%s474 + $0x158] sm:$0xff] %v2690
        %2819 = vst [vmem:[%s474 + $0x160] sm:$0xff] %v2691
        %2820 = vst [vmem:[%s474 + $0x168] sm:$0xff] %v2692
        %2821 = vst [vmem:[%s474 + $0x170] sm:$0xff] %v2693
        %2822 = vst [vmem:[%s474 + $0x178] sm:$0xff] %v2694
        %2823 = vst [vmem:[%s474 + $0x180] sm:$0xff] %v2695
        %2824 = vst [vmem:[%s474 + $0x188] sm:$0xff] %v2696
        %2825 = vst [vmem:[%s474 + $0x190] sm:$0xff] %v2697
        %2826 = vst [vmem:[%s474 + $0x198] sm:$0xff] %v2698
        %2827 = vst [vmem:[%s474 + $0x1a0] sm:$0xff] %v2699
        %2828 = vst [vmem:[%s474 + $0x1a8] sm:$0xff] %v2700
        %2829 = vst [vmem:[%s474 + $0x1b0] sm:$0xff] %v2701
        %2830 = vst [vmem:[%s474 + $0x1b8] sm:$0xff] %v2702
        %2831 = vst [vmem:[%s474 + $0x1c0] sm:$0xff] %v2703
        %2832 = vst [vmem:[%s474 + $0x1c8] sm:$0xff] %v2704
        %2833 = vst [vmem:[%s474 + $0x1d0] sm:$0xff] %v2705
        %2834 = vst [vmem:[%s474 + $0x1d8] sm:$0xff] %v2706
        %2835 = vst [vmem:[%s474 + $0x1e0] sm:$0xff] %v2707
        %2836 = vst [vmem:[%s474 + $0x1e8] sm:$0xff] %v2708
        %2837 = vst [vmem:[%s474 + $0x1f0] sm:$0xff] %v2709
        %2838 = vst [vmem:[%s474 + $0x1f8] sm:$0xff] %v2710
        %2839 = vst [vmem:[%s474 + $0x200] sm:$0xff] %v2711
        %2840 = vst [vmem:[%s474 + $0x208] sm:$0xff] %v2712
        %2841 = vst [vmem:[%s474 + $0x210] sm:$0xff] %v2713
        %2842 = vst [vmem:[%s474 + $0x218] sm:$0xff] %v2714
        %2843 = vst [vmem:[%s474 + $0x220] sm:$0xff] %v2715
        %2844 = vst [vmem:[%s474 + $0x228] sm:$0xff] %v2716
        %2845 = vst [vmem:[%s474 + $0x230] sm:$0xff] %v2717
        %2846 = vst [vmem:[%s474 + $0x238] sm:$0xff] %v2718
        %2847 = vst [vmem:[%s474 + $0x240] sm:$0xff] %v2719
        %2848 = vst [vmem:[%s474 + $0x248] sm:$0xff] %v2720
        %2849 = vst [vmem:[%s474 + $0x250] sm:$0xff] %v2721
        %2850 = vst [vmem:[%s474 + $0x258] sm:$0xff] %v2722
        %2851 = vst [vmem:[%s474 + $0x260] sm:$0xff] %v2723
        %2852 = vst [vmem:[%s474 + $0x268] sm:$0xff] %v2724
        %2853 = vst [vmem:[%s474 + $0x270] sm:$0xff] %v2725
        %2854 = vst [vmem:[%s474 + $0x278] sm:$0xff] %v2726
        %2855 = vst [vmem:[%s474 + $0x280] sm:$0xff] %v2727
        %2856 = vst [vmem:[%s474 + $0x288] sm:$0xff] %v2728
        %2857 = vst [vmem:[%s474 + $0x290] sm:$0xff] %v2729
        %2858 = vst [vmem:[%s474 + $0x298] sm:$0xff] %v2730
        %2859 = vst [vmem:[%s474 + $0x2a0] sm:$0xff] %v2731
        %2860 = vst [vmem:[%s474 + $0x2a8] sm:$0xff] %v2732
        %2861 = vst [vmem:[%s474 + $0x2b0] sm:$0xff] %v2733
        %2862 = vst [vmem:[%s474 + $0x2b8] sm:$0xff] %v2734
        %2863 = vst [vmem:[%s474 + $0x2c0] sm:$0xff] %v2735
        %2864 = vst [vmem:[%s474 + $0x2c8] sm:$0xff] %v2736
        %2865 = vst [vmem:[%s474 + $0x2d0] sm:$0xff] %v2737
        %2866 = vst [vmem:[%s474 + $0x2d8] sm:$0xff] %v2738
        %2867 = vst [vmem:[%s474 + $0x2e0] sm:$0xff] %v2739
        %2868 = vst [vmem:[%s474 + $0x2e8] sm:$0xff] %v2740
        %2869 = vst [vmem:[%s474 + $0x2f0] sm:$0xff] %v2741
        %2870 = vst [vmem:[%s474 + $0x2f8] sm:$0xff] %v2742
        %2871 = vst [vmem:[%s474 + $0x300] sm:$0xff] %v2743
        %2872 = vst [vmem:[%s474 + $0x308] sm:$0xff] %v2744
        %2873 = vst [vmem:[%s474 + $0x310] sm:$0xff] %v2745
        %2874 = vst [vmem:[%s474 + $0x318] sm:$0xff] %v2746
        %2875 = vst [vmem:[%s474 + $0x320] sm:$0xff] %v2747
        %2876 = vst [vmem:[%s474 + $0x328] sm:$0xff] %v2748
        %2877 = vst [vmem:[%s474 + $0x330] sm:$0xff] %v2749
        %2878 = vst [vmem:[%s474 + $0x338] sm:$0xff] %v2750
        %2879 = vst [vmem:[%s474 + $0x340] sm:$0xff] %v2751
        %2880 = vst [vmem:[%s474 + $0x348] sm:$0xff] %v2752
        %2881 = vst [vmem:[%s474 + $0x350] sm:$0xff] %v2753
        %2882 = vst [vmem:[%s474 + $0x358] sm:$0xff] %v2754
        %2883 = vst [vmem:[%s474 + $0x360] sm:$0xff] %v2755
        %2884 = vst [vmem:[%s474 + $0x368] sm:$0xff] %v2756
        %2885 = vst [vmem:[%s474 + $0x370] sm:$0xff] %v2757
        %2886 = vst [vmem:[%s474 + $0x378] sm:$0xff] %v2758
        %2887 = vst [vmem:[%s474 + $0x380] sm:$0xff] %v2759
        %2888 = vst [vmem:[%s474 + $0x388] sm:$0xff] %v2760
        %2889 = vst [vmem:[%s474 + $0x390] sm:$0xff] %v2761
        %2890 = vst [vmem:[%s474 + $0x398] sm:$0xff] %v2762
        %2891 = vst [vmem:[%s474 + $0x3a0] sm:$0xff] %v2763
        %2892 = vst [vmem:[%s474 + $0x3a8] sm:$0xff] %v2764
        %2893 = vst [vmem:[%s474 + $0x3b0] sm:$0xff] %v2765
        %2894 = vst [vmem:[%s474 + $0x3b8] sm:$0xff] %v2766
        %2895 = vst [vmem:[%s474 + $0x3c0] sm:$0xff] %v2767
        %2896 = vst [vmem:[%s474 + $0x3c8] sm:$0xff] %v2768
        %2897 = vst [vmem:[%s474 + $0x3d0] sm:$0xff] %v2769
        %2898 = vst [vmem:[%s474 + $0x3d8] sm:$0xff] %v2770
        %2899 = vst [vmem:[%s474 + $0x3e0] sm:$0xff] %v2771
        %2900 = vst [vmem:[%s474 + $0x3e8] sm:$0xff] %v2772
        %2901 = vst [vmem:[%s474 + $0x3f0] sm:$0xff] %v2773
        %2902 = vst [vmem:[%s474 + $0x3f8] sm:$0xff] %v2774
        %s2903 = sand.u32 %s236, 1
        %s2904 = scalar_lea.sflag [#allocation4], %s2903
        %s2905 = sand.u32 %s236, 1
        %s2906 = smul.addr %s2905, 1024
        %s2907 = scalar_lea.vmem [#allocation10], %s2906
        // Predicated region
        $region65: #{tpu_custom_call.1} parent=47 // pred_check
          %p2908 = pneg %p246
        $region66: #{tpu_custom_call.1} parent=47 // pred_check_branch
          %2910 = sbr.rel (%p2908) target = $region68
        $region67: #{tpu_custom_call.1} parent=47 // pred_region
          %s2911 = smul.u32 32, %s34
          %s2912 = smul.u32 4, %s35
          %s2914 = ssub.s32 16384, 16384
          %2915 = vsyncadd %s2904, %s2914
          %s2916 = smul.addr %s2911, 8
          %s2917 = sadd.s32 %s2912, %s2916
          %s2918 = smul.addr %s2917, 128
          %s2919 = scalar_lea.hbm %s7, %s2918
          %s2920 = sshll.u32 %s2907, 4
          %s2921 = int_to_ptr.vmem [resolvable:$true] %s2920
          %2926 = dma.vmem_to_hbm [thread:$0]  %s2921, 16384, %s2919, %s2904, 512, 1024, 32
        $region68: #{tpu_custom_call.1} parent=47 // pred_fallthru
          _
      $region48: #{tpu_custom_call.1} parent=5 // pred_fallthru
        _
      %p2927 = scmp.le.s32.totalorder 2, %s25
      // Predicated region
      $region69: #{tpu_custom_call.1} parent=5 // pred_check
        %p2928 = pneg %p2927
      $region70: #{tpu_custom_call.1} parent=5 // pred_check_branch
        %2930 = sbr.rel (%p2928) target = $region72
      $region71: #{tpu_custom_call.1} parent=5 // pred_region
        %s2931 = ssub.s32 %s25, 2
        // Predicated region
        $region73: #{tpu_custom_call.1} parent=71 // pred_check
          %p2932 = pneg %p252
        $region74: #{tpu_custom_call.1} parent=71 // pred_check_branch
          %2934 = sbr.rel (%p2932) target = $region76
        $region75: #{tpu_custom_call.1} parent=71 // pred_region
          %s2935 = sand.u32 %s237, 1
          %s2936 = scalar_lea.sflag [#allocation4], %s2935
          %s2937 = sand.u32 %s237, 1
          %s2938 = smul.addr %s2937, 1024
          %s2939 = scalar_lea.vmem [#allocation10], %s2938
          %2940 = dma.done %s2936, 16384
        $region76: #{tpu_custom_call.1} parent=71 // pred_fallthru
          _
      $region72: #{tpu_custom_call.1} parent=5 // pred_fallthru
        _
    $region6: #{tpu_custom_call.1} parent=1 // loop_footer
      %s29 = sadd.s32 1, %s25
    $region7: #{tpu_custom_call.1} parent=1 // loop_footer_branch
      %24 = sbr.rel target = $region3
    $region8: #{tpu_custom_call.1} parent=1 // loop_exit
      _
    %2941 = vsyncpa [#allocation3], 1
    %s2942 = scalar_lea.sflag [#allocation3], 1
    %2943 = vsyncpa %s2942, 1
    %2944 = vsyncpa [#allocation6], 1
    %s2945 = scalar_lea.sflag [#allocation6], 1
    %2946 = vsyncpa %s2945, 1
    %2947 = vsyncpa [#allocation9], 1
    %s2948 = scalar_lea.sflag [#allocation9], 1
    %2949 = vsyncpa %s2948, 1
    %2950 = vsyncpa [#allocation4], 1
    %s2951 = scalar_lea.sflag [#allocation4], 1
    %2952 = vsyncpa %s2951, 1

</llo_original>
